<compile_context>
chip_gen: v7x
topology: tpu7x:2x2x1
jax: 0.10.0
libtpu: 0.0.40
codegen_flags: <defaults>
</compile_context>

<pallas_src>
import numpy as np
import jax
import jax.numpy as jnp
from jax import lax
from jax.experimental import pallas as pl
from jax.experimental.pallas import tpu as pltpu

EPS = 1e-5
# Tap ordering k = (dy+1)*3 + (dx+1), matching OIHW weight layout w[:, :, ky, kx].
_OFFS = [(dy, dx) for dy in (-1, 0, 1) for dx in (-1, 0, 1)]


# ----------------------------------------------------------------------------
# Host-side constants: boundary masks for the roll-based shifts and the small
# pooled-branch operators (pool / pooled-shift / nearest-upsample), built once
# with numpy and block-diagonalized over the batch chunk folded into lanes.
# ----------------------------------------------------------------------------
def build_operators(H, W, pool_r, batch_chunk, matmul_dtype=jnp.float32):
    HW = H * W
    Hp, Wp = H // pool_r, W // pool_r
    HWp = Hp * Wp

    # (9, HW) boundary mask for zero-padded 3x3 taps at full resolution.
    mask1 = np.zeros((9, HW), np.float32)
    for k, (dy, dx) in enumerate(_OFFS):
        for h in range(H):
            for w in range(W):
                if 0 <= h + dy < H and 0 <= w + dx < W:
                    mask1[k, h * W + w] = 1.0
    mask = np.tile(mask1, (1, batch_chunk))                     # (9, N)

    # (HW, HWp) average-pool operator.
    pool1 = np.zeros((HW, HWp), np.float32)
    for hp in range(Hp):
        for wp in range(Wp):
            j = hp * Wp + wp
            for dy in range(pool_r):
                for dx in range(pool_r):
                    pool1[(hp * pool_r + dy) * W + (wp * pool_r + dx), j] = 1.0 / (pool_r * pool_r)

    # (9, HWp, HWp) zero-padded shift operators on the pooled grid.
    sp1 = np.zeros((9, HWp, HWp), np.float32)
    for k, (dy, dx) in enumerate(_OFFS):
        for h in range(Hp):
            for w in range(Wp):
                hs, ws = h + dy, w + dx
                if 0 <= hs < Hp and 0 <= ws < Wp:
                    sp1[k, hs * Wp + ws, h * Wp + w] = 1.0

    # (HWp, HW) nearest-neighbour 2x upsample.
    up1 = np.zeros((HWp, HW), np.float32)
    for h in range(H):
        for w in range(W):
            up1[(h // pool_r) * Wp + (w // pool_r), h * W + w] = 1.0

    def bdiag(m, n):
        r, c = m.shape
        out = np.zeros((n * r, n * c), m.dtype)
        for i in range(n):
            out[i * r:(i + 1) * r, i * c:(i + 1) * c] = m
        return out

    poolM = bdiag(pool1, batch_chunk)                           # (N, Np)
    upM = bdiag(up1, batch_chunk)                               # (Np, N)
    spM = np.stack([bdiag(sp1[k], batch_chunk) for k in range(9)], axis=0)  # (9, Np, Np)

    cast = lambda a: jnp.asarray(a, matmul_dtype)
    return cast(mask), cast(poolM), cast(spM), cast(upM)


# ----------------------------------------------------------------------------
# Host-side parameter folding (eval-mode BN folded into conv weights / biases).
# ----------------------------------------------------------------------------
def _scale_shift(bn):
    g, b, m, v = bn
    s = g / jnp.sqrt(v + EPS)
    return s, b - s * m


def pack_params(raw, matmul_dtype=jnp.float32):
    (w1a, bn1a, w1b, bn1b, wk1, bnk1, wk2, bnk2, wk3, bnk3, wk4, bnk4) = raw
    P = w1a.shape[0]

    sa, ta = _scale_shift(bn1a)
    sb, tb = _scale_shift(bn1b)
    # Fused projection matmul: rows [0:P] -> raw conv1_a (identity branch),
    # rows [P:2P] -> conv1_b with bn1_b scale folded in.
    proj_w = jnp.concatenate(
        [w1a[:, :, 0, 0], sb[:, None] * w1b[:, :, 0, 0]], axis=0).astype(matmul_dtype)

    def fold3(w, bn):
        s, t = _scale_shift(bn)
        wf = w * s[:, None, None, None]                 # (P, P, 3, 3), BN scale folded
        # Pack to (P, 9P): column k*P + i holds w[o, i, ky, kx] with k = ky*3 + kx,
        # matching the stacked (9P, N) shifted-activation buffer in the kernel.
        return jnp.transpose(wf, (0, 2, 3, 1)).reshape(P, 9 * P), t

    wp1, t1 = fold3(wk1, bnk1)
    wp2, t2 = fold3(wk2, bnk2)
    wp3, t3 = fold3(wk3, bnk3)
    wp4, t4 = fold3(wk4, bnk4)
    kw_all = jnp.stack([wp1, wp2, wp3, wp4], axis=0).astype(matmul_dtype)     # (4, P, 9P)
    aff = jnp.stack([sa, ta, tb, t1, t2, t3, t4], axis=1).astype(jnp.float32)  # (P, 7)
    return proj_w, aff, kw_all


# ----------------------------------------------------------------------------
# Fused SCConv kernel (one grid step == one batch chunk, lane-dense layout).
# ----------------------------------------------------------------------------
def _make_kernel(W, planes, matmul_dtype):
    md = matmul_dtype
    P = planes

    def dot32(a, b):
        return jnp.dot(a.astype(md), b.astype(md), preferred_element_type=jnp.float32)

    def kernel(x_ref, pw_ref, aff_ref, kw_ref, mask_ref, pool_ref, sp_ref, up_ref, o_ref):
        N = x_ref.shape[-1]                              # batch_chunk * H * W (static)

        # Fused 1x1 projections: one matmul yields conv1_a (identity) and conv1_b.
        proj = dot32(pw_ref[...], x_ref[...])            # (2P, N), f32
        identity = proj[:P, :]
        a = jnp.maximum(aff_ref[:, 0:1] * identity + aff_ref[:, 1:2], 0.0)  # relu(bn1_a)
        b = jnp.maximum(proj[P:, :] + aff_ref[:, 2:3], 0.0)                 # relu(bn1_b)

        mask = mask_ref[...]                             # (9, N), {0,1}

        def stacked_shifts(act):
            # 9 zero-padded 3x3-tap shifts via static lane rolls (XLU) + boundary
            # masks (VPU); stacked into (9P, N) for a single MXU matmul.  Rolling
            # across the batch-folded lane axis is safe: every column whose rolled
            # source lies outside its own image is exactly a masked column.
            act = act.astype(md)
            parts = []
            for k, (dy, dx) in enumerate(_OFFS):
                off = dy * W + dx
                if off == 0:
                    parts.append(act)                    # centre tap, mask == 1
                else:
                    sh = pltpu.roll(act, (-off) % N, 1)  # out[i] = act[i + off]
                    parts.append(sh * mask[k:k + 1, :])
            return jnp.concatenate(parts, axis=0)        # (9P, N)

        def conv3x3(act, w_idx, bias_col):
            return dot32(kw_ref[w_idx], stacked_shifts(act)) + aff_ref[:, bias_col:bias_col + 1]

        # k2 branch: pool once, 3x3 on the small pooled grid (block-diag shift
        # matrices, negligible MXU work), folded-BN bias, nearest upsample.
        pooled = dot32(a, pool_ref[...])                 # (P, Np)
        pparts = [dot32(pooled, sp_ref[k]) for k in range(9)]
        k2 = dot32(kw_ref[1], jnp.concatenate(pparts, axis=0)) + aff_ref[:, 4:5]
        k2_up = dot32(k2, up_ref[...])                   # (P, N)

        # sigmoid(identity + upsample(k2(a))) with exp + reciprocal (EUP path).
        gate = pl.reciprocal(1.0 + jnp.exp(-(identity + k2_up)))

        k3 = conv3x3(a, 2, 5)                            # bn_k3(conv_k3(a))
        out1 = conv3x3(k3 * gate, 3, 6)                  # k4(k3(a) * gate)
        out2 = conv3x3(b, 0, 3)                          # k1(b)

        # Channel concat written directly into the lane-dense (2P, N) output slab.
        o_ref[0:P, :] = out1
        o_ref[P:2 * P, :] = out2

    return kernel


def make_scconv(raw, H, W, pool_r=2, batch_chunk=1, matmul_dtype=jnp.float32):
    assert H % pool_r == 0 and W % pool_r == 0, "H, W must be divisible by pooling_r"
    proj_w, aff, kw_all = pack_params(raw, matmul_dtype)
    P = aff.shape[0]
    Cin = proj_w.shape[1]
    mask, poolM, spM, upM = build_operators(H, W, pool_r, batch_chunk, matmul_dtype)
    HW = H * W
    N = batch_chunk * HW
    assert N % 128 == 0, "per-step lane width (batch_chunk*H*W) must be a multiple of 128"
    kernel = _make_kernel(W, P, matmul_dtype)

    def forward(x):
        B = x.shape[0]
        assert B % batch_chunk == 0, "batch must be divisible by batch_chunk"
        assert x.shape[1:] == (Cin, H, W)
        # Lane-dense (C, B*HW) layout: batch folded into the lane/N axis.
        x_flat = jnp.transpose(x.reshape(B, Cin, HW), (1, 0, 2)).reshape(Cin, B * HW)
        x_flat = x_flat.astype(matmul_dtype)

        out_flat = pl.pallas_call(
            kernel,
            out_shape=jax.ShapeDtypeStruct((2 * P, B * HW), jnp.float32),
            grid=(B // batch_chunk,),
            in_specs=[
                pl.BlockSpec((Cin, N), lambda i: (0, i)),
                pl.BlockSpec(proj_w.shape, lambda i: (0, 0)),
                pl.BlockSpec(aff.shape, lambda i: (0, 0)),
                pl.BlockSpec(kw_all.shape, lambda i: (0, 0, 0)),
                pl.BlockSpec(mask.shape, lambda i: (0, 0)),
                pl.BlockSpec(poolM.shape, lambda i: (0, 0)),
                pl.BlockSpec(spM.shape, lambda i: (0, 0, 0)),
                pl.BlockSpec(upM.shape, lambda i: (0, 0)),
            ],
            out_specs=pl.BlockSpec((2 * P, N), lambda i: (0, i)),
            compiler_params=pltpu.CompilerParams(
                dimension_semantics=("parallel",)),
        )(x_flat, proj_w, aff, kw_all, mask, poolM, spM, upM)
        return jnp.transpose(out_flat.reshape(2 * P, B, HW), (1, 0, 2)).reshape(B, 2 * P, H, W)

    return forward


# ----------------------------------------------------------------------------
# Pure-JAX reference (mirrors the PyTorch forward, eval-mode BN) for validation
# ----------------------------------------------------------------------------
def reference_forward(x, raw, pool_r=2):
    (w1a, bn1a, w1b, bn1b, wk1, bnk1, wk2, bnk2, wk3, bnk3, wk4, bnk4) = raw

    def bn(y, p):
        g, b, m, v = p
        return (y - m[None, :, None, None]) / jnp.sqrt(v[None, :, None, None] + EPS) \
               * g[None, :, None, None] + b[None, :, None, None]

    def conv3(y, w):
        return lax.conv_general_dilated(
            y, w, window_strides=(1, 1), padding=((1, 1), (1, 1)),
            dimension_numbers=("NCHW", "OIHW", "NCHW"))

    out_a = jnp.einsum("oi,bihw->bohw", w1a[:, :, 0, 0], x)
    identity = out_a
    out_a = jax.nn.relu(bn(out_a, bn1a))
    out_b = jax.nn.relu(bn(jnp.einsum("oi,bihw->bohw", w1b[:, :, 0, 0], x), bn1b))

    B, C, H, W = identity.shape
    pooled = out_a.reshape(B, C, H // pool_r, pool_r, W // pool_r, pool_r).mean(axis=(3, 5))
    k2 = bn(conv3(pooled, wk2), bnk2)
    k2_up = jnp.repeat(jnp.repeat(k2, pool_r, axis=2), pool_r, axis=3)   # nearest interp
    gate = jax.nn.sigmoid(identity + k2_up)
    out = bn(conv3(out_a, wk3), bnk3) * gate
    out1 = bn(conv3(out, wk4), bnk4)
    out2 = bn(conv3(out_b, wk1), bnk1)
    return jnp.concatenate([out1, out2], axis=1)


if __name__ == "__main__":
    B, Cin, P, H, W = 2, 4, 8, 16, 16        # inplanes=4, planes=8
    POOL_R = 2

    key = jax.random.PRNGKey(0)
    ks = jax.random.split(key, 13)

    def conv_init(kk, o, i, kh, kw_dim):
        return jax.random.normal(kk, (o, i, kh, kw_dim), jnp.float32) / np.sqrt(i * kh * kw_dim)

    def bn_init(kk, c):
        k1, k2, k3, k4 = jax.random.split(kk, 4)
        g = 1.0 + 0.2 * jax.random.normal(k1, (c,), jnp.float32)
        b = 0.1 * jax.random.normal(k2, (c,), jnp.float32)
        m = 0.1 * jax.random.normal(k3, (c,), jnp.float32)
        v = 0.5 + jax.random.uniform(k4, (c,), jnp.float32)
        return (g, b, m, v)

    x = jax.random.normal(ks[0], (B, Cin, H, W), jnp.float32)
    raw = (conv_init(ks[1], P, Cin, 1, 1), bn_init(ks[2], P),     # conv1_a / bn1_a
           conv_init(ks[3], P, Cin, 1, 1), bn_init(ks[4], P),     # conv1_b / bn1_b
           conv_init(ks[5], P, P, 3, 3), bn_init(ks[6], P),       # k1
           conv_init(ks[7], P, P, 3, 3), bn_init(ks[8], P),       # k2
           conv_init(ks[9], P, P, 3, 3), bn_init(ks[10], P),      # k3
           conv_init(ks[11], P, P, 3, 3), bn_init(ks[12], P))     # k4

    # batch_chunk=1 keeps a parallel grid axis of extent B (v7x megacore);
    # larger batches can use batch_chunk>1 to widen N per step.
    # matmul_dtype=jnp.bfloat16 is recommended for v6e/v7x production use;
    # f32 here keeps the 2e-4 self-check meaningful.
    fwd = jax.jit(make_scconv(raw, H, W, pool_r=POOL_R, batch_chunk=1,
                              matmul_dtype=jnp.float32))
    out = jax.block_until_ready(fwd(x))

    ref = reference_forward(x, raw, pool_r=POOL_R)
    assert out.shape == (B, 2 * P, H, W)
    err = float(jnp.max(jnp.abs(out - ref)))
    assert jnp.allclose(out, ref, rtol=2e-4, atol=2e-4), f"max abs err {err}"
    print("KERNEL_OK")
</pallas_src>

<mosaic_0001>
module attributes {stable_mosaic.version = 11 : i64} {
  func.func @kernel(%arg0: i32, %arg1: memref<4x256xf32, #tpu.memory_space<vmem>>, %arg2: memref<16x4xf32, #tpu.memory_space<vmem>>, %arg3: memref<8x7xf32, #tpu.memory_space<vmem>>, %arg4: memref<4x8x72xf32, #tpu.memory_space<vmem>>, %arg5: memref<9x256xf32, #tpu.memory_space<vmem>>, %arg6: memref<256x64xf32, #tpu.memory_space<vmem>>, %arg7: memref<9x64x64xf32, #tpu.memory_space<vmem>>, %arg8: memref<64x256xf32, #tpu.memory_space<vmem>>, %arg9: memref<16x256xf32, #tpu.memory_space<vmem>>) attributes {dimension_semantics = [#tpu.dimension_semantics<parallel>], iteration_bounds = array<i64: 2>, scalar_prefetch = 0 : i64, scratch_operands = 0 : i64, tpu.core_type = #tpu.core_type<tc>, window_params = [{transform_indices = @transform_0, window_bounds = array<i64: 4, 256>}, {pipeline_mode = #tpu.pipeline_mode<synchronous>, transform_indices = @transform_1, window_bounds = array<i64: 16, 4>}, {pipeline_mode = #tpu.pipeline_mode<synchronous>, transform_indices = @transform_2, window_bounds = array<i64: 8, 7>}, {pipeline_mode = #tpu.pipeline_mode<synchronous>, transform_indices = @transform_3, window_bounds = array<i64: 4, 8, 72>}, {pipeline_mode = #tpu.pipeline_mode<synchronous>, transform_indices = @transform_4, window_bounds = array<i64: 9, 256>}, {pipeline_mode = #tpu.pipeline_mode<synchronous>, transform_indices = @transform_5, window_bounds = array<i64: 256, 64>}, {pipeline_mode = #tpu.pipeline_mode<synchronous>, transform_indices = @transform_6, window_bounds = array<i64: 9, 64, 64>}, {pipeline_mode = #tpu.pipeline_mode<synchronous>, transform_indices = @transform_7, window_bounds = array<i64: 64, 256>}, {transform_indices = @transform_8, window_bounds = array<i64: 16, 256>}]} {
    %c0 = arith.constant 0 : index
    %c0_0 = arith.constant 0 : index
    %0 = vector.load %arg2[%c0, %c0_0] : memref<16x4xf32, #tpu.memory_space<vmem>>, vector<16x4xf32>
    %c0_1 = arith.constant 0 : index
    %c0_2 = arith.constant 0 : index
    %1 = vector.load %arg1[%c0_1, %c0_2] : memref<4x256xf32, #tpu.memory_space<vmem>>, vector<4x256xf32>
    %cst = arith.constant dense<0.000000e+00> : vector<16x256xf32>
    %2 = tpu.matmul %0, %1, %cst {dimension_numbers = #tpu.dot_dimension_numbers<[1], [0], [0], [1], [0, 0, 1, 1], [], []>} : vector<16x4xf32>, vector<4x256xf32>, vector<16x256xf32> -> vector<16x256xf32>
    %3 = vector.extract_strided_slice %2 {offsets = [0, 0], sizes = [8, 256], strides = [1, 1]} : vector<16x256xf32> to vector<8x256xf32>
    %c0_3 = arith.constant 0 : index
    %c0_4 = arith.constant 0 : index
    %4 = vector.load %arg3[%c0_3, %c0_4] : memref<8x7xf32, #tpu.memory_space<vmem>>, vector<8x1xf32>
    %5 = vector.broadcast %4 : vector<8x1xf32> to vector<8x256xf32>
    %6 = arith.mulf %5, %3 : vector<8x256xf32>
    %c0_5 = arith.constant 0 : index
    %c1 = arith.constant 1 : index
    %7 = vector.load %arg3[%c0_5, %c1] : memref<8x7xf32, #tpu.memory_space<vmem>>, vector<8x1xf32>
    %8 = vector.broadcast %7 : vector<8x1xf32> to vector<8x256xf32>
    %9 = arith.addf %6, %8 : vector<8x256xf32>
    %cst_6 = arith.constant 0.000000e+00 : f32
    %10 = vector.broadcast %cst_6 : f32 to vector<8x256xf32>
    %11 = arith.maximumf %9, %10 : vector<8x256xf32>
    %12 = vector.extract_strided_slice %2 {offsets = [8, 0], sizes = [8, 256], strides = [1, 1]} : vector<16x256xf32> to vector<8x256xf32>
    %c0_7 = arith.constant 0 : index
    %c2 = arith.constant 2 : index
    %13 = vector.load %arg3[%c0_7, %c2] : memref<8x7xf32, #tpu.memory_space<vmem>>, vector<8x1xf32>
    %14 = vector.broadcast %13 : vector<8x1xf32> to vector<8x256xf32>
    %15 = arith.addf %12, %14 : vector<8x256xf32>
    %cst_8 = arith.constant 0.000000e+00 : f32
    %16 = vector.broadcast %cst_8 : f32 to vector<8x256xf32>
    %17 = arith.maximumf %15, %16 : vector<8x256xf32>
    %c0_9 = arith.constant 0 : index
    %c0_10 = arith.constant 0 : index
    %18 = vector.load %arg5[%c0_9, %c0_10] : memref<9x256xf32, #tpu.memory_space<vmem>>, vector<9x256xf32>
    %c0_11 = arith.constant 0 : index
    %c0_12 = arith.constant 0 : index
    %19 = vector.load %arg6[%c0_11, %c0_12] : memref<256x64xf32, #tpu.memory_space<vmem>>, vector<256x64xf32>
    %cst_13 = arith.constant dense<0.000000e+00> : vector<8x64xf32>
    %20 = tpu.matmul %11, %19, %cst_13 {dimension_numbers = #tpu.dot_dimension_numbers<[1], [0], [0], [1], [0, 0, 1, 1], [], []>} : vector<8x256xf32>, vector<256x64xf32>, vector<8x64xf32> -> vector<8x64xf32>
    %c0_14 = arith.constant 0 : index
    %c0_15 = arith.constant 0 : index
    %c0_16 = arith.constant 0 : index
    %21 = vector.load %arg7[%c0_14, %c0_15, %c0_16] : memref<9x64x64xf32, #tpu.memory_space<vmem>>, vector<1x64x64xf32>
    %22 = vector.shape_cast %21 : vector<1x64x64xf32> to vector<64x64xf32>
    %cst_17 = arith.constant dense<0.000000e+00> : vector<8x64xf32>
    %23 = tpu.matmul %20, %22, %cst_17 {dimension_numbers = #tpu.dot_dimension_numbers<[1], [0], [0], [1], [0, 0, 1, 1], [], []>} : vector<8x64xf32>, vector<64x64xf32>, vector<8x64xf32> -> vector<8x64xf32>
    %c1_18 = arith.constant 1 : index
    %c0_19 = arith.constant 0 : index
    %c0_20 = arith.constant 0 : index
    %24 = vector.load %arg7[%c1_18, %c0_19, %c0_20] : memref<9x64x64xf32, #tpu.memory_space<vmem>>, vector<1x64x64xf32>
    %25 = vector.shape_cast %24 : vector<1x64x64xf32> to vector<64x64xf32>
    %cst_21 = arith.constant dense<0.000000e+00> : vector<8x64xf32>
    %26 = tpu.matmul %20, %25, %cst_21 {dimension_numbers = #tpu.dot_dimension_numbers<[1], [0], [0], [1], [0, 0, 1, 1], [], []>} : vector<8x64xf32>, vector<64x64xf32>, vector<8x64xf32> -> vector<8x64xf32>
    %c2_22 = arith.constant 2 : index
    %c0_23 = arith.constant 0 : index
    %c0_24 = arith.constant 0 : index
    %27 = vector.load %arg7[%c2_22, %c0_23, %c0_24] : memref<9x64x64xf32, #tpu.memory_space<vmem>>, vector<1x64x64xf32>
    %28 = vector.shape_cast %27 : vector<1x64x64xf32> to vector<64x64xf32>
    %cst_25 = arith.constant dense<0.000000e+00> : vector<8x64xf32>
    %29 = tpu.matmul %20, %28, %cst_25 {dimension_numbers = #tpu.dot_dimension_numbers<[1], [0], [0], [1], [0, 0, 1, 1], [], []>} : vector<8x64xf32>, vector<64x64xf32>, vector<8x64xf32> -> vector<8x64xf32>
    %c3 = arith.constant 3 : index
    %c0_26 = arith.constant 0 : index
    %c0_27 = arith.constant 0 : index
    %30 = vector.load %arg7[%c3, %c0_26, %c0_27] : memref<9x64x64xf32, #tpu.memory_space<vmem>>, vector<1x64x64xf32>
    %31 = vector.shape_cast %30 : vector<1x64x64xf32> to vector<64x64xf32>
    %cst_28 = arith.constant dense<0.000000e+00> : vector<8x64xf32>
    %32 = tpu.matmul %20, %31, %cst_28 {dimension_numbers = #tpu.dot_dimension_numbers<[1], [0], [0], [1], [0, 0, 1, 1], [], []>} : vector<8x64xf32>, vector<64x64xf32>, vector<8x64xf32> -> vector<8x64xf32>
    %c4 = arith.constant 4 : index
    %c0_29 = arith.constant 0 : index
    %c0_30 = arith.constant 0 : index
    %33 = vector.load %arg7[%c4, %c0_29, %c0_30] : memref<9x64x64xf32, #tpu.memory_space<vmem>>, vector<1x64x64xf32>
    %34 = vector.shape_cast %33 : vector<1x64x64xf32> to vector<64x64xf32>
    %cst_31 = arith.constant dense<0.000000e+00> : vector<8x64xf32>
    %35 = tpu.matmul %20, %34, %cst_31 {dimension_numbers = #tpu.dot_dimension_numbers<[1], [0], [0], [1], [0, 0, 1, 1], [], []>} : vector<8x64xf32>, vector<64x64xf32>, vector<8x64xf32> -> vector<8x64xf32>
    %c5 = arith.constant 5 : index
    %c0_32 = arith.constant 0 : index
    %c0_33 = arith.constant 0 : index
    %36 = vector.load %arg7[%c5, %c0_32, %c0_33] : memref<9x64x64xf32, #tpu.memory_space<vmem>>, vector<1x64x64xf32>
    %37 = vector.shape_cast %36 : vector<1x64x64xf32> to vector<64x64xf32>
    %cst_34 = arith.constant dense<0.000000e+00> : vector<8x64xf32>
    %38 = tpu.matmul %20, %37, %cst_34 {dimension_numbers = #tpu.dot_dimension_numbers<[1], [0], [0], [1], [0, 0, 1, 1], [], []>} : vector<8x64xf32>, vector<64x64xf32>, vector<8x64xf32> -> vector<8x64xf32>
    %c6 = arith.constant 6 : index
    %c0_35 = arith.constant 0 : index
    %c0_36 = arith.constant 0 : index
    %39 = vector.load %arg7[%c6, %c0_35, %c0_36] : memref<9x64x64xf32, #tpu.memory_space<vmem>>, vector<1x64x64xf32>
    %40 = vector.shape_cast %39 : vector<1x64x64xf32> to vector<64x64xf32>
    %cst_37 = arith.constant dense<0.000000e+00> : vector<8x64xf32>
    %41 = tpu.matmul %20, %40, %cst_37 {dimension_numbers = #tpu.dot_dimension_numbers<[1], [0], [0], [1], [0, 0, 1, 1], [], []>} : vector<8x64xf32>, vector<64x64xf32>, vector<8x64xf32> -> vector<8x64xf32>
    %c7 = arith.constant 7 : index
    %c0_38 = arith.constant 0 : index
    %c0_39 = arith.constant 0 : index
    %42 = vector.load %arg7[%c7, %c0_38, %c0_39] : memref<9x64x64xf32, #tpu.memory_space<vmem>>, vector<1x64x64xf32>
    %43 = vector.shape_cast %42 : vector<1x64x64xf32> to vector<64x64xf32>
    %cst_40 = arith.constant dense<0.000000e+00> : vector<8x64xf32>
    %44 = tpu.matmul %20, %43, %cst_40 {dimension_numbers = #tpu.dot_dimension_numbers<[1], [0], [0], [1], [0, 0, 1, 1], [], []>} : vector<8x64xf32>, vector<64x64xf32>, vector<8x64xf32> -> vector<8x64xf32>
    %c8 = arith.constant 8 : index
    %c0_41 = arith.constant 0 : index
    %c0_42 = arith.constant 0 : index
    %45 = vector.load %arg7[%c8, %c0_41, %c0_42] : memref<9x64x64xf32, #tpu.memory_space<vmem>>, vector<1x64x64xf32>
    %46 = vector.shape_cast %45 : vector<1x64x64xf32> to vector<64x64xf32>
    %cst_43 = arith.constant dense<0.000000e+00> : vector<8x64xf32>
    %47 = tpu.matmul %20, %46, %cst_43 {dimension_numbers = #tpu.dot_dimension_numbers<[1], [0], [0], [1], [0, 0, 1, 1], [], []>} : vector<8x64xf32>, vector<64x64xf32>, vector<8x64xf32> -> vector<8x64xf32>
    %c1_44 = arith.constant 1 : index
    %c0_45 = arith.constant 0 : index
    %c0_46 = arith.constant 0 : index
    %48 = vector.load %arg4[%c1_44, %c0_45, %c0_46] : memref<4x8x72xf32, #tpu.memory_space<vmem>>, vector<1x8x72xf32>
    %49 = vector.shape_cast %48 : vector<1x8x72xf32> to vector<8x72xf32>
    %50 = tpu.concatenate %23, %26, %29, %32, %35, %38, %41, %44, %47 in 0 : vector<8x64xf32>, vector<8x64xf32>, vector<8x64xf32>, vector<8x64xf32>, vector<8x64xf32>, vector<8x64xf32>, vector<8x64xf32>, vector<8x64xf32>, vector<8x64xf32> -> vector<72x64xf32>
    %cst_47 = arith.constant dense<0.000000e+00> : vector<8x64xf32>
    %51 = tpu.matmul %49, %50, %cst_47 {dimension_numbers = #tpu.dot_dimension_numbers<[1], [0], [0], [1], [0, 0, 1, 1], [], []>} : vector<8x72xf32>, vector<72x64xf32>, vector<8x64xf32> -> vector<8x64xf32>
    %c0_48 = arith.constant 0 : index
    %c4_49 = arith.constant 4 : index
    %52 = vector.load %arg3[%c0_48, %c4_49] : memref<8x7xf32, #tpu.memory_space<vmem>>, vector<8x1xf32>
    %53 = vector.broadcast %52 : vector<8x1xf32> to vector<8x64xf32>
    %54 = arith.addf %51, %53 : vector<8x64xf32>
    %c0_50 = arith.constant 0 : index
    %c0_51 = arith.constant 0 : index
    %55 = vector.load %arg8[%c0_50, %c0_51] : memref<64x256xf32, #tpu.memory_space<vmem>>, vector<64x256xf32>
    %cst_52 = arith.constant dense<0.000000e+00> : vector<8x256xf32>
    %56 = tpu.matmul %54, %55, %cst_52 {dimension_numbers = #tpu.dot_dimension_numbers<[1], [0], [0], [1], [0, 0, 1, 1], [], []>} : vector<8x64xf32>, vector<64x256xf32>, vector<8x256xf32> -> vector<8x256xf32>
    %57 = arith.addf %3, %56 : vector<8x256xf32>
    %cst_53 = arith.constant 0.000000e+00 : f32
    %58 = vector.broadcast %cst_53 : f32 to vector<8x256xf32>
    %59 = arith.subf %58, %57 : vector<8x256xf32>
    %60 = math.exp %59 : vector<8x256xf32>
    %cst_54 = arith.constant 1.000000e+00 : f32
    %61 = vector.broadcast %cst_54 : f32 to vector<8x256xf32>
    %62 = arith.addf %61, %60 : vector<8x256xf32>
    %63 = tpu.reciprocal %62 : vector<8x256xf32> -> vector<8x256xf32>
    %c2_55 = arith.constant 2 : index
    %c0_56 = arith.constant 0 : index
    %c0_57 = arith.constant 0 : index
    %64 = vector.load %arg4[%c2_55, %c0_56, %c0_57] : memref<4x8x72xf32, #tpu.memory_space<vmem>>, vector<1x8x72xf32>
    %65 = vector.shape_cast %64 : vector<1x8x72xf32> to vector<8x72xf32>
    %c17_i32 = arith.constant 17 : i32
    %66 = tpu.dynamic_rotate %11 by %c17_i32 dim 1 : vector<8x256xf32>, i32 -> vector<8x256xf32>
    %67 = vector.extract_strided_slice %18 {offsets = [0, 0], sizes = [1, 256], strides = [1, 1]} : vector<9x256xf32> to vector<1x256xf32>
    %68 = vector.broadcast %67 : vector<1x256xf32> to vector<8x256xf32>
    %69 = arith.mulf %66, %68 : vector<8x256xf32>
    %c16_i32 = arith.constant 16 : i32
    %70 = tpu.dynamic_rotate %11 by %c16_i32 dim 1 : vector<8x256xf32>, i32 -> vector<8x256xf32>
    %71 = vector.extract_strided_slice %18 {offsets = [1, 0], sizes = [1, 256], strides = [1, 1]} : vector<9x256xf32> to vector<1x256xf32>
    %72 = vector.broadcast %71 : vector<1x256xf32> to vector<8x256xf32>
    %73 = arith.mulf %70, %72 : vector<8x256xf32>
    %c15_i32 = arith.constant 15 : i32
    %74 = tpu.dynamic_rotate %11 by %c15_i32 dim 1 : vector<8x256xf32>, i32 -> vector<8x256xf32>
    %75 = vector.extract_strided_slice %18 {offsets = [2, 0], sizes = [1, 256], strides = [1, 1]} : vector<9x256xf32> to vector<1x256xf32>
    %76 = vector.broadcast %75 : vector<1x256xf32> to vector<8x256xf32>
    %77 = arith.mulf %74, %76 : vector<8x256xf32>
    %c1_i32 = arith.constant 1 : i32
    %78 = tpu.dynamic_rotate %11 by %c1_i32 dim 1 : vector<8x256xf32>, i32 -> vector<8x256xf32>
    %79 = vector.extract_strided_slice %18 {offsets = [3, 0], sizes = [1, 256], strides = [1, 1]} : vector<9x256xf32> to vector<1x256xf32>
    %80 = vector.broadcast %79 : vector<1x256xf32> to vector<8x256xf32>
    %81 = arith.mulf %78, %80 : vector<8x256xf32>
    %c255_i32 = arith.constant 255 : i32
    %82 = tpu.dynamic_rotate %11 by %c255_i32 dim 1 : vector<8x256xf32>, i32 -> vector<8x256xf32>
    %83 = vector.extract_strided_slice %18 {offsets = [5, 0], sizes = [1, 256], strides = [1, 1]} : vector<9x256xf32> to vector<1x256xf32>
    %84 = vector.broadcast %83 : vector<1x256xf32> to vector<8x256xf32>
    %85 = arith.mulf %82, %84 : vector<8x256xf32>
    %c241_i32 = arith.constant 241 : i32
    %86 = tpu.dynamic_rotate %11 by %c241_i32 dim 1 : vector<8x256xf32>, i32 -> vector<8x256xf32>
    %87 = vector.extract_strided_slice %18 {offsets = [6, 0], sizes = [1, 256], strides = [1, 1]} : vector<9x256xf32> to vector<1x256xf32>
    %88 = vector.broadcast %87 : vector<1x256xf32> to vector<8x256xf32>
    %89 = arith.mulf %86, %88 : vector<8x256xf32>
    %c240_i32 = arith.constant 240 : i32
    %90 = tpu.dynamic_rotate %11 by %c240_i32 dim 1 : vector<8x256xf32>, i32 -> vector<8x256xf32>
    %91 = vector.extract_strided_slice %18 {offsets = [7, 0], sizes = [1, 256], strides = [1, 1]} : vector<9x256xf32> to vector<1x256xf32>
    %92 = vector.broadcast %91 : vector<1x256xf32> to vector<8x256xf32>
    %93 = arith.mulf %90, %92 : vector<8x256xf32>
    %c239_i32 = arith.constant 239 : i32
    %94 = tpu.dynamic_rotate %11 by %c239_i32 dim 1 : vector<8x256xf32>, i32 -> vector<8x256xf32>
    %95 = vector.extract_strided_slice %18 {offsets = [8, 0], sizes = [1, 256], strides = [1, 1]} : vector<9x256xf32> to vector<1x256xf32>
    %96 = vector.broadcast %95 : vector<1x256xf32> to vector<8x256xf32>
    %97 = arith.mulf %94, %96 : vector<8x256xf32>
    %98 = tpu.concatenate %69, %73, %77, %81, %11, %85, %89, %93, %97 in 0 : vector<8x256xf32>, vector<8x256xf32>, vector<8x256xf32>, vector<8x256xf32>, vector<8x256xf32>, vector<8x256xf32>, vector<8x256xf32>, vector<8x256xf32>, vector<8x256xf32> -> vector<72x256xf32>
    %cst_58 = arith.constant dense<0.000000e+00> : vector<8x256xf32>
    %99 = tpu.matmul %65, %98, %cst_58 {dimension_numbers = #tpu.dot_dimension_numbers<[1], [0], [0], [1], [0, 0, 1, 1], [], []>} : vector<8x72xf32>, vector<72x256xf32>, vector<8x256xf32> -> vector<8x256xf32>
    %c0_59 = arith.constant 0 : index
    %c5_60 = arith.constant 5 : index
    %100 = vector.load %arg3[%c0_59, %c5_60] : memref<8x7xf32, #tpu.memory_space<vmem>>, vector<8x1xf32>
    %101 = vector.broadcast %100 : vector<8x1xf32> to vector<8x256xf32>
    %102 = arith.addf %99, %101 : vector<8x256xf32>
    %103 = arith.mulf %102, %63 : vector<8x256xf32>
    %c3_61 = arith.constant 3 : index
    %c0_62 = arith.constant 0 : index
    %c0_63 = arith.constant 0 : index
    %104 = vector.load %arg4[%c3_61, %c0_62, %c0_63] : memref<4x8x72xf32, #tpu.memory_space<vmem>>, vector<1x8x72xf32>
    %105 = vector.shape_cast %104 : vector<1x8x72xf32> to vector<8x72xf32>
    %c17_i32_64 = arith.constant 17 : i32
    %106 = tpu.dynamic_rotate %103 by %c17_i32_64 dim 1 : vector<8x256xf32>, i32 -> vector<8x256xf32>
    %107 = vector.extract_strided_slice %18 {offsets = [0, 0], sizes = [1, 256], strides = [1, 1]} : vector<9x256xf32> to vector<1x256xf32>
    %108 = vector.broadcast %107 : vector<1x256xf32> to vector<8x256xf32>
    %109 = arith.mulf %106, %108 : vector<8x256xf32>
    %c16_i32_65 = arith.constant 16 : i32
    %110 = tpu.dynamic_rotate %103 by %c16_i32_65 dim 1 : vector<8x256xf32>, i32 -> vector<8x256xf32>
    %111 = vector.extract_strided_slice %18 {offsets = [1, 0], sizes = [1, 256], strides = [1, 1]} : vector<9x256xf32> to vector<1x256xf32>
    %112 = vector.broadcast %111 : vector<1x256xf32> to vector<8x256xf32>
    %113 = arith.mulf %110, %112 : vector<8x256xf32>
    %c15_i32_66 = arith.constant 15 : i32
    %114 = tpu.dynamic_rotate %103 by %c15_i32_66 dim 1 : vector<8x256xf32>, i32 -> vector<8x256xf32>
    %115 = vector.extract_strided_slice %18 {offsets = [2, 0], sizes = [1, 256], strides = [1, 1]} : vector<9x256xf32> to vector<1x256xf32>
    %116 = vector.broadcast %115 : vector<1x256xf32> to vector<8x256xf32>
    %117 = arith.mulf %114, %116 : vector<8x256xf32>
    %c1_i32_67 = arith.constant 1 : i32
    %118 = tpu.dynamic_rotate %103 by %c1_i32_67 dim 1 : vector<8x256xf32>, i32 -> vector<8x256xf32>
    %119 = vector.extract_strided_slice %18 {offsets = [3, 0], sizes = [1, 256], strides = [1, 1]} : vector<9x256xf32> to vector<1x256xf32>
    %120 = vector.broadcast %119 : vector<1x256xf32> to vector<8x256xf32>
    %121 = arith.mulf %118, %120 : vector<8x256xf32>
    %c255_i32_68 = arith.constant 255 : i32
    %122 = tpu.dynamic_rotate %103 by %c255_i32_68 dim 1 : vector<8x256xf32>, i32 -> vector<8x256xf32>
    %123 = vector.extract_strided_slice %18 {offsets = [5, 0], sizes = [1, 256], strides = [1, 1]} : vector<9x256xf32> to vector<1x256xf32>
    %124 = vector.broadcast %123 : vector<1x256xf32> to vector<8x256xf32>
    %125 = arith.mulf %122, %124 : vector<8x256xf32>
    %c241_i32_69 = arith.constant 241 : i32
    %126 = tpu.dynamic_rotate %103 by %c241_i32_69 dim 1 : vector<8x256xf32>, i32 -> vector<8x256xf32>
    %127 = vector.extract_strided_slice %18 {offsets = [6, 0], sizes = [1, 256], strides = [1, 1]} : vector<9x256xf32> to vector<1x256xf32>
    %128 = vector.broadcast %127 : vector<1x256xf32> to vector<8x256xf32>
    %129 = arith.mulf %126, %128 : vector<8x256xf32>
    %c240_i32_70 = arith.constant 240 : i32
    %130 = tpu.dynamic_rotate %103 by %c240_i32_70 dim 1 : vector<8x256xf32>, i32 -> vector<8x256xf32>
    %131 = vector.extract_strided_slice %18 {offsets = [7, 0], sizes = [1, 256], strides = [1, 1]} : vector<9x256xf32> to vector<1x256xf32>
    %132 = vector.broadcast %131 : vector<1x256xf32> to vector<8x256xf32>
    %133 = arith.mulf %130, %132 : vector<8x256xf32>
    %c239_i32_71 = arith.constant 239 : i32
    %134 = tpu.dynamic_rotate %103 by %c239_i32_71 dim 1 : vector<8x256xf32>, i32 -> vector<8x256xf32>
    %135 = vector.extract_strided_slice %18 {offsets = [8, 0], sizes = [1, 256], strides = [1, 1]} : vector<9x256xf32> to vector<1x256xf32>
    %136 = vector.broadcast %135 : vector<1x256xf32> to vector<8x256xf32>
    %137 = arith.mulf %134, %136 : vector<8x256xf32>
    %138 = tpu.concatenate %109, %113, %117, %121, %103, %125, %129, %133, %137 in 0 : vector<8x256xf32>, vector<8x256xf32>, vector<8x256xf32>, vector<8x256xf32>, vector<8x256xf32>, vector<8x256xf32>, vector<8x256xf32>, vector<8x256xf32>, vector<8x256xf32> -> vector<72x256xf32>
    %cst_72 = arith.constant dense<0.000000e+00> : vector<8x256xf32>
    %139 = tpu.matmul %105, %138, %cst_72 {dimension_numbers = #tpu.dot_dimension_numbers<[1], [0], [0], [1], [0, 0, 1, 1], [], []>} : vector<8x72xf32>, vector<72x256xf32>, vector<8x256xf32> -> vector<8x256xf32>
    %c0_73 = arith.constant 0 : index
    %c6_74 = arith.constant 6 : index
    %140 = vector.load %arg3[%c0_73, %c6_74] : memref<8x7xf32, #tpu.memory_space<vmem>>, vector<8x1xf32>
    %141 = vector.broadcast %140 : vector<8x1xf32> to vector<8x256xf32>
    %142 = arith.addf %139, %141 : vector<8x256xf32>
    %c0_75 = arith.constant 0 : index
    %c0_76 = arith.constant 0 : index
    %c0_77 = arith.constant 0 : index
    %143 = vector.load %arg4[%c0_75, %c0_76, %c0_77] : memref<4x8x72xf32, #tpu.memory_space<vmem>>, vector<1x8x72xf32>
    %144 = vector.shape_cast %143 : vector<1x8x72xf32> to vector<8x72xf32>
    %c17_i32_78 = arith.constant 17 : i32
    %145 = tpu.dynamic_rotate %17 by %c17_i32_78 dim 1 : vector<8x256xf32>, i32 -> vector<8x256xf32>
    %146 = vector.extract_strided_slice %18 {offsets = [0, 0], sizes = [1, 256], strides = [1, 1]} : vector<9x256xf32> to vector<1x256xf32>
    %147 = vector.broadcast %146 : vector<1x256xf32> to vector<8x256xf32>
    %148 = arith.mulf %145, %147 : vector<8x256xf32>
    %c16_i32_79 = arith.constant 16 : i32
    %149 = tpu.dynamic_rotate %17 by %c16_i32_79 dim 1 : vector<8x256xf32>, i32 -> vector<8x256xf32>
    %150 = vector.extract_strided_slice %18 {offsets = [1, 0], sizes = [1, 256], strides = [1, 1]} : vector<9x256xf32> to vector<1x256xf32>
    %151 = vector.broadcast %150 : vector<1x256xf32> to vector<8x256xf32>
    %152 = arith.mulf %149, %151 : vector<8x256xf32>
    %c15_i32_80 = arith.constant 15 : i32
    %153 = tpu.dynamic_rotate %17 by %c15_i32_80 dim 1 : vector<8x256xf32>, i32 -> vector<8x256xf32>
    %154 = vector.extract_strided_slice %18 {offsets = [2, 0], sizes = [1, 256], strides = [1, 1]} : vector<9x256xf32> to vector<1x256xf32>
    %155 = vector.broadcast %154 : vector<1x256xf32> to vector<8x256xf32>
    %156 = arith.mulf %153, %155 : vector<8x256xf32>
    %c1_i32_81 = arith.constant 1 : i32
    %157 = tpu.dynamic_rotate %17 by %c1_i32_81 dim 1 : vector<8x256xf32>, i32 -> vector<8x256xf32>
    %158 = vector.extract_strided_slice %18 {offsets = [3, 0], sizes = [1, 256], strides = [1, 1]} : vector<9x256xf32> to vector<1x256xf32>
    %159 = vector.broadcast %158 : vector<1x256xf32> to vector<8x256xf32>
    %160 = arith.mulf %157, %159 : vector<8x256xf32>
    %c255_i32_82 = arith.constant 255 : i32
    %161 = tpu.dynamic_rotate %17 by %c255_i32_82 dim 1 : vector<8x256xf32>, i32 -> vector<8x256xf32>
    %162 = vector.extract_strided_slice %18 {offsets = [5, 0], sizes = [1, 256], strides = [1, 1]} : vector<9x256xf32> to vector<1x256xf32>
    %163 = vector.broadcast %162 : vector<1x256xf32> to vector<8x256xf32>
    %164 = arith.mulf %161, %163 : vector<8x256xf32>
    %c241_i32_83 = arith.constant 241 : i32
    %165 = tpu.dynamic_rotate %17 by %c241_i32_83 dim 1 : vector<8x256xf32>, i32 -> vector<8x256xf32>
    %166 = vector.extract_strided_slice %18 {offsets = [6, 0], sizes = [1, 256], strides = [1, 1]} : vector<9x256xf32> to vector<1x256xf32>
    %167 = vector.broadcast %166 : vector<1x256xf32> to vector<8x256xf32>
    %168 = arith.mulf %165, %167 : vector<8x256xf32>
    %c240_i32_84 = arith.constant 240 : i32
    %169 = tpu.dynamic_rotate %17 by %c240_i32_84 dim 1 : vector<8x256xf32>, i32 -> vector<8x256xf32>
    %170 = vector.extract_strided_slice %18 {offsets = [7, 0], sizes = [1, 256], strides = [1, 1]} : vector<9x256xf32> to vector<1x256xf32>
    %171 = vector.broadcast %170 : vector<1x256xf32> to vector<8x256xf32>
    %172 = arith.mulf %169, %171 : vector<8x256xf32>
    %c239_i32_85 = arith.constant 239 : i32
    %173 = tpu.dynamic_rotate %17 by %c239_i32_85 dim 1 : vector<8x256xf32>, i32 -> vector<8x256xf32>
    %174 = vector.extract_strided_slice %18 {offsets = [8, 0], sizes = [1, 256], strides = [1, 1]} : vector<9x256xf32> to vector<1x256xf32>
    %175 = vector.broadcast %174 : vector<1x256xf32> to vector<8x256xf32>
    %176 = arith.mulf %173, %175 : vector<8x256xf32>
    %177 = tpu.concatenate %148, %152, %156, %160, %17, %164, %168, %172, %176 in 0 : vector<8x256xf32>, vector<8x256xf32>, vector<8x256xf32>, vector<8x256xf32>, vector<8x256xf32>, vector<8x256xf32>, vector<8x256xf32>, vector<8x256xf32>, vector<8x256xf32> -> vector<72x256xf32>
    %cst_86 = arith.constant dense<0.000000e+00> : vector<8x256xf32>
    %178 = tpu.matmul %144, %177, %cst_86 {dimension_numbers = #tpu.dot_dimension_numbers<[1], [0], [0], [1], [0, 0, 1, 1], [], []>} : vector<8x72xf32>, vector<72x256xf32>, vector<8x256xf32> -> vector<8x256xf32>
    %c0_87 = arith.constant 0 : index
    %c3_88 = arith.constant 3 : index
    %179 = vector.load %arg3[%c0_87, %c3_88] : memref<8x7xf32, #tpu.memory_space<vmem>>, vector<8x1xf32>
    %180 = vector.broadcast %179 : vector<8x1xf32> to vector<8x256xf32>
    %181 = arith.addf %178, %180 : vector<8x256xf32>
    %c0_89 = arith.constant 0 : index
    %c0_90 = arith.constant 0 : index
    %182 = vector.load %arg9[%c0_89, %c0_90] : memref<16x256xf32, #tpu.memory_space<vmem>>, vector<8x256xf32>
    tpu.vector_store %arg9[%c0_89, %c0_90], %142 {strides = array<i32>} : memref<16x256xf32, #tpu.memory_space<vmem>>, vector<8x256xf32>,
    %c8_91 = arith.constant 8 : index
    %c0_92 = arith.constant 0 : index
    %183 = vector.load %arg9[%c8_91, %c0_92] : memref<16x256xf32, #tpu.memory_space<vmem>>, vector<8x256xf32>
    tpu.vector_store %arg9[%c8_91, %c0_92], %181 {strides = array<i32>} : memref<16x256xf32, #tpu.memory_space<vmem>>, vector<8x256xf32>,
    return
  }
  func.func @transform_0(%arg0: i32) -> (i32, i32) {
    %c0_i32 = arith.constant 0 : i32
    %c0_i32_0 = arith.constant 0 : i32
    return %c0_i32, %arg0 : i32, i32
  }
  func.func @transform_1(%arg0: i32) -> (i32, i32) {
    %c0_i32 = arith.constant 0 : i32
    %c0_i32_0 = arith.constant 0 : i32
    %c0_i32_1 = arith.constant 0 : i32
    return %c0_i32, %c0_i32_0 : i32, i32
  }
  func.func @transform_2(%arg0: i32) -> (i32, i32) {
    %c0_i32 = arith.constant 0 : i32
    %c0_i32_0 = arith.constant 0 : i32
    %c0_i32_1 = arith.constant 0 : i32
    return %c0_i32, %c0_i32_0 : i32, i32
  }
  func.func @transform_3(%arg0: i32) -> (i32, i32, i32) {
    %c0_i32 = arith.constant 0 : i32
    %c0_i32_0 = arith.constant 0 : i32
    %c0_i32_1 = arith.constant 0 : i32
    %c0_i32_2 = arith.constant 0 : i32
    return %c0_i32, %c0_i32_0, %c0_i32_1 : i32, i32, i32
  }
  func.func @transform_4(%arg0: i32) -> (i32, i32) {
    %c0_i32 = arith.constant 0 : i32
    %c0_i32_0 = arith.constant 0 : i32
    %c0_i32_1 = arith.constant 0 : i32
    return %c0_i32, %c0_i32_0 : i32, i32
  }
  func.func @transform_5(%arg0: i32) -> (i32, i32) {
    %c0_i32 = arith.constant 0 : i32
    %c0_i32_0 = arith.constant 0 : i32
    %c0_i32_1 = arith.constant 0 : i32
    return %c0_i32, %c0_i32_0 : i32, i32
  }
  func.func @transform_6(%arg0: i32) -> (i32, i32, i32) {
    %c0_i32 = arith.constant 0 : i32
    %c0_i32_0 = arith.constant 0 : i32
    %c0_i32_1 = arith.constant 0 : i32
    %c0_i32_2 = arith.constant 0 : i32
    return %c0_i32, %c0_i32_0, %c0_i32_1 : i32, i32, i32
  }
  func.func @transform_7(%arg0: i32) -> (i32, i32) {
    %c0_i32 = arith.constant 0 : i32
    %c0_i32_0 = arith.constant 0 : i32
    %c0_i32_1 = arith.constant 0 : i32
    return %c0_i32, %c0_i32_0 : i32, i32
  }
  func.func @transform_8(%arg0: i32) -> (i32, i32) {
    %c0_i32 = arith.constant 0 : i32
    %c0_i32_0 = arith.constant 0 : i32
    return %c0_i32, %arg0 : i32, i32
  }
}

</mosaic_0001>

<llo_original>
// kernel: forward.1
$region0: #{forward.1}
  #allocation0 [shape = 'u32[]', space=smem, size = 0x4, offset = 0x4, fixed_abs, tag = 'smem constant byte address 0x4 - core index']
  #allocation1 [shape = 'u32[144,128]{1,0:T(1,128)}', space=vmem, size = 0x12000, scoped, tag = 'internal scratch']
  %s0 = inlined_call_operand.vmem [shape: f32[4,512], index: 0, kind: input, shape index: {}]
  %s1 = inlined_call_operand.vmem [shape: f32[16,4], index: 1, kind: input, shape index: {}]
  %s2 = inlined_call_operand.vmem [shape: f32[8,7], index: 2, kind: input, shape index: {}]
  %s3 = inlined_call_operand.vmem [shape: f32[4,8,72], index: 3, kind: input, shape index: {}]
  %s4 = inlined_call_operand.vmem [shape: f32[9,256], index: 4, kind: input, shape index: {}]
  %s5 = inlined_call_operand.hbm [shape: f32[256,64], index: 5, kind: input, shape index: {}]
  %s6 = inlined_call_operand.hbm [shape: f32[9,64,64], index: 6, kind: input, shape index: {}]
  %s7 = inlined_call_operand.vmem [shape: f32[64,256], index: 7, kind: input, shape index: {}]
  %s8 = inlined_call_operand.vmem [shape: f32[16,512], index: 8, kind: output, shape index: {}]
  %s9 = sld [smem:[#allocation0]]
  $region92: #{forward.1} parent=0
    _
  %s11 = ssub.s32 1, %s9
  %s12 = scalar_select 0, %s11, %s9
  $region1: #{forward.1} parent=0
    #allocation2 [shape = 'u8[131072]{0}', space=vmem, size = 0x20000, scoped, tag = 'input window, operand 5, single buffered']
    #allocation3 [shape = 's32[2]{0}', space=sflag, size = 0x8, scoped, tag = 'scoped memory for forward.1']
    #allocation4 [shape = 'u8[294912]{0}', space=vmem, size = 0x48000, scoped, tag = 'input window, operand 6, single buffered']
    #allocation5 [shape = 's32[1]{0}', space=sflag, size = 0x4, scoped, tag = 'scoped memory for forward.1']
    #allocation6 [shape = 'u8[32768]{0}', space=vmem, size = 0x8000, scoped, tag = 'output window, operand 0']
    %13 = vsyncpa [#allocation3], 0
    %14 = vsyncpa [#allocation5], 0
    loop: start=0, step=1, limit=4
    $region2: #{forward.1} parent=1 // loop_pre_header
      _
    $region3: #{forward.1} parent=1 // loop_header
      %s16 = sphi 0, %s20
      %p17 = scmp.ge.s32.totalorder %s16, 4
      %s26 = sphi 0, %s28
      %s29 = sphi 0, %s26
      %s30 = sphi 0, %s29
      %s46 = sphi 0, %s30
      %s50 = sphi 0, %s50
      %s52 = sphi 0, %s50
      %s53 = sphi 0, %s52
      %s67 = sphi 0, %s53
      %s71 = sphi 0, %s71
      %s73 = sphi 0, %s71
      %s74 = sphi 0, %s73
      %s88 = sphi 0, %s74
      %s92 = sphi 0, %s92
      %s94 = sphi 0, %s92
      %s95 = sphi 0, %s94
      %s109 = sphi 0, %s95
      %s113 = sphi 0, %s113
      %s115 = sphi 0, %s113
      %s116 = sphi 0, %s115
      %s130 = sphi 0, %s116
      %s134 = sphi 0, %s134
      %s136 = sphi 0, %s134
      %s137 = sphi 0, %s136
      %s151 = sphi 0, %s137
      %s155 = sphi 0, %s155
      %s157 = sphi 0, %s155
      %s158 = sphi 0, %s157
      %s172 = sphi 0, %s158
      %s176 = sphi 0, %s176
      %s178 = sphi 0, %s176
      %s179 = sphi 0, %s178
      %s193 = sphi 0, %s179
      %s199 = sphi 0, %s201
      %s202 = sphi 0, %s199
      %s203 = sphi 0, %s202
      %s219 = sphi 0, %s203
    $region4: #{forward.1} parent=1 // loop_header_branch
      %19 = sbr.rel (%p17) target = $region8
    $region5: #{forward.1} parent=1 // loop_body
      %s21 = ssub.s32 %s16, 1
      %s22 = ssub.s32 %s16, 2
      %s23 = sadd.s32 %s16, 1
      %s24 = ssub.s32 %s16, %s23
      %p25 = scmp.eq.s32.totalorder %s24, 0
      %s27 = sadd.s32 %s26, 1
      %s28 = scalar_select %p25, %s26, %s27
      %p31 = pneg %p25
      %p32 = scmp.eq.s32.totalorder %s16, 1
      %p33 = por %p31, %p32
      %p34 = scmp.ne.s32.totalorder %s26, %s29
      %p35 = scmp.eq.s32.totalorder %s16, 0
      %p36 = por %p34, %p35
      %p37 = scmp.ne.s32.totalorder %s26, %s29
      %p38 = scmp.eq.s32.totalorder %s21, 1
      %p39 = por %p37, %p38
      %p40 = scmp.ne.s32.totalorder %s29, %s30
      %p41 = scmp.eq.s32.totalorder %s21, 0
      %p42 = por %p40, %p41
      %p43 = scmp.ne.s32.totalorder %s29, %s30
      %p44 = scmp.eq.s32.totalorder %s22, 1
      %p45 = por %p43, %p44
      %p47 = scmp.ne.s32.totalorder %s30, %s46
      %p48 = scmp.eq.s32.totalorder %s22, 0
      %p49 = por %p47, %p48
      %s51 = sadd.s32 %s50, 1
      %p54 = scmp.eq.s32.totalorder %s16, 1
      %p55 = scmp.ne.s32.totalorder %s50, %s52
      %p56 = scmp.eq.s32.totalorder %s16, 0
      %p57 = por %p55, %p56
      %p58 = scmp.ne.s32.totalorder %s50, %s52
      %p59 = scmp.eq.s32.totalorder %s21, 1
      %p60 = por %p58, %p59
      %p61 = scmp.ne.s32.totalorder %s52, %s53
      %p62 = scmp.eq.s32.totalorder %s21, 0
      %p63 = por %p61, %p62
      %p64 = scmp.ne.s32.totalorder %s52, %s53
      %p65 = scmp.eq.s32.totalorder %s22, 1
      %p66 = por %p64, %p65
      %p68 = scmp.ne.s32.totalorder %s53, %s67
      %p69 = scmp.eq.s32.totalorder %s22, 0
      %p70 = por %p68, %p69
      %s72 = sadd.s32 %s71, 1
      %p75 = scmp.eq.s32.totalorder %s16, 1
      %p76 = scmp.ne.s32.totalorder %s71, %s73
      %p77 = scmp.eq.s32.totalorder %s16, 0
      %p78 = por %p76, %p77
      %p79 = scmp.ne.s32.totalorder %s71, %s73
      %p80 = scmp.eq.s32.totalorder %s21, 1
      %p81 = por %p79, %p80
      %p82 = scmp.ne.s32.totalorder %s73, %s74
      %p83 = scmp.eq.s32.totalorder %s21, 0
      %p84 = por %p82, %p83
      %p85 = scmp.ne.s32.totalorder %s73, %s74
      %p86 = scmp.eq.s32.totalorder %s22, 1
      %p87 = por %p85, %p86
      %p89 = scmp.ne.s32.totalorder %s74, %s88
      %p90 = scmp.eq.s32.totalorder %s22, 0
      %p91 = por %p89, %p90
      %s93 = sadd.s32 %s92, 1
      %p96 = scmp.eq.s32.totalorder %s16, 1
      %p97 = scmp.ne.s32.totalorder %s92, %s94
      %p98 = scmp.eq.s32.totalorder %s16, 0
      %p99 = por %p97, %p98
      %p100 = scmp.ne.s32.totalorder %s92, %s94
      %p101 = scmp.eq.s32.totalorder %s21, 1
      %p102 = por %p100, %p101
      %p103 = scmp.ne.s32.totalorder %s94, %s95
      %p104 = scmp.eq.s32.totalorder %s21, 0
      %p105 = por %p103, %p104
      %p106 = scmp.ne.s32.totalorder %s94, %s95
      %p107 = scmp.eq.s32.totalorder %s22, 1
      %p108 = por %p106, %p107
      %p110 = scmp.ne.s32.totalorder %s95, %s109
      %p111 = scmp.eq.s32.totalorder %s22, 0
      %p112 = por %p110, %p111
      %s114 = sadd.s32 %s113, 1
      %p117 = scmp.eq.s32.totalorder %s16, 1
      %p118 = scmp.ne.s32.totalorder %s113, %s115
      %p119 = scmp.eq.s32.totalorder %s16, 0
      %p120 = por %p118, %p119
      %p121 = scmp.ne.s32.totalorder %s113, %s115
      %p122 = scmp.eq.s32.totalorder %s21, 1
      %p123 = por %p121, %p122
      %p124 = scmp.ne.s32.totalorder %s115, %s116
      %p125 = scmp.eq.s32.totalorder %s21, 0
      %p126 = por %p124, %p125
      %p127 = scmp.ne.s32.totalorder %s115, %s116
      %p128 = scmp.eq.s32.totalorder %s22, 1
      %p129 = por %p127, %p128
      %p131 = scmp.ne.s32.totalorder %s116, %s130
      %p132 = scmp.eq.s32.totalorder %s22, 0
      %p133 = por %p131, %p132
      %s135 = sadd.s32 %s134, 1
      %p138 = scmp.eq.s32.totalorder %s16, 1
      %p139 = scmp.ne.s32.totalorder %s134, %s136
      %p140 = scmp.eq.s32.totalorder %s16, 0
      %p141 = por %p139, %p140
      %p142 = scmp.ne.s32.totalorder %s134, %s136
      %p143 = scmp.eq.s32.totalorder %s21, 1
      %p144 = por %p142, %p143
      %p145 = scmp.ne.s32.totalorder %s136, %s137
      %p146 = scmp.eq.s32.totalorder %s21, 0
      %p147 = por %p145, %p146
      %p148 = scmp.ne.s32.totalorder %s136, %s137
      %p149 = scmp.eq.s32.totalorder %s22, 1
      %p150 = por %p148, %p149
      %p152 = scmp.ne.s32.totalorder %s137, %s151
      %p153 = scmp.eq.s32.totalorder %s22, 0
      %p154 = por %p152, %p153
      %s156 = sadd.s32 %s155, 1
      %p159 = scmp.eq.s32.totalorder %s16, 1
      %p160 = scmp.ne.s32.totalorder %s155, %s157
      %p161 = scmp.eq.s32.totalorder %s16, 0
      %p162 = por %p160, %p161
      %p163 = scmp.ne.s32.totalorder %s155, %s157
      %p164 = scmp.eq.s32.totalorder %s21, 1
      %p165 = por %p163, %p164
      %p166 = scmp.ne.s32.totalorder %s157, %s158
      %p167 = scmp.eq.s32.totalorder %s21, 0
      %p168 = por %p166, %p167
      %p169 = scmp.ne.s32.totalorder %s157, %s158
      %p170 = scmp.eq.s32.totalorder %s22, 1
      %p171 = por %p169, %p170
      %p173 = scmp.ne.s32.totalorder %s158, %s172
      %p174 = scmp.eq.s32.totalorder %s22, 0
      %p175 = por %p173, %p174
      %s177 = sadd.s32 %s176, 1
      %p180 = scmp.eq.s32.totalorder %s16, 1
      %p181 = scmp.ne.s32.totalorder %s176, %s178
      %p182 = scmp.eq.s32.totalorder %s16, 0
      %p183 = por %p181, %p182
      %p184 = scmp.ne.s32.totalorder %s176, %s178
      %p185 = scmp.eq.s32.totalorder %s21, 1
      %p186 = por %p184, %p185
      %p187 = scmp.ne.s32.totalorder %s178, %s179
      %p188 = scmp.eq.s32.totalorder %s21, 0
      %p189 = por %p187, %p188
      %p190 = scmp.ne.s32.totalorder %s178, %s179
      %p191 = scmp.eq.s32.totalorder %s22, 1
      %p192 = por %p190, %p191
      %p194 = scmp.ne.s32.totalorder %s179, %s193
      %p195 = scmp.eq.s32.totalorder %s22, 0
      %p196 = por %p194, %p195
      %s197 = ssub.s32 %s16, %s23
      %p198 = scmp.eq.s32.totalorder %s197, 0
      %s200 = sadd.s32 %s199, 1
      %s201 = scalar_select %p198, %s199, %s200
      %p204 = pneg %p198
      %p205 = scmp.eq.s32.totalorder %s16, 1
      %p206 = por %p204, %p205
      %p207 = scmp.ne.s32.totalorder %s199, %s202
      %p208 = scmp.eq.s32.totalorder %s16, 0
      %p209 = por %p207, %p208
      %p210 = scmp.ne.s32.totalorder %s199, %s202
      %p211 = scmp.eq.s32.totalorder %s21, 1
      %p212 = por %p210, %p211
      %p213 = scmp.ne.s32.totalorder %s202, %s203
      %p214 = scmp.eq.s32.totalorder %s21, 0
      %p215 = por %p213, %p214
      %p216 = scmp.ne.s32.totalorder %s202, %s203
      %p217 = scmp.eq.s32.totalorder %s22, 1
      %p218 = por %p216, %p217
      %p220 = scmp.ne.s32.totalorder %s203, %s219
      %p221 = scmp.eq.s32.totalorder %s22, 0
      %p222 = por %p220, %p221
      %p223 = scmp.le.s32.totalorder 1, %s16
      %p224 = scmp.lt.s32.totalorder %s16, 3
      %p225 = pnand %p223, %p224
      %p226 = pneg %p225
      // Predicated region
      $region9: #{forward.1} parent=5 // pred_check
        _
      $region10: #{forward.1} parent=5 // pred_check_branch
        %228 = sbr.rel (%p225) target = $region12
      $region11: #{forward.1} parent=5 // pred_region
        %s229 = ssub.s32 %s16, 1
        // Predicated region
        $region13: #{forward.1} parent=11 // pred_check
          %p230 = pneg %p63
        $region14: #{forward.1} parent=11 // pred_check_branch
          %232 = sbr.rel (%p230) target = $region16
        $region15: #{forward.1} parent=11 // pred_region
          _
        $region16: #{forward.1} parent=11 // pred_fallthru
          _
        // Predicated region
        $region17: #{forward.1} parent=11 // pred_check
          %p233 = pneg %p84
        $region18: #{forward.1} parent=11 // pred_check_branch
          %235 = sbr.rel (%p233) target = $region20
        $region19: #{forward.1} parent=11 // pred_region
          _
        $region20: #{forward.1} parent=11 // pred_fallthru
          _
        // Predicated region
        $region21: #{forward.1} parent=11 // pred_check
          %p236 = pneg %p105
        $region22: #{forward.1} parent=11 // pred_check_branch
          %238 = sbr.rel (%p236) target = $region24
        $region23: #{forward.1} parent=11 // pred_region
          _
        $region24: #{forward.1} parent=11 // pred_fallthru
          _
        // Predicated region
        $region25: #{forward.1} parent=11 // pred_check
          %p239 = pneg %p126
        $region26: #{forward.1} parent=11 // pred_check_branch
          %241 = sbr.rel (%p239) target = $region28
        $region27: #{forward.1} parent=11 // pred_region
          _
        $region28: #{forward.1} parent=11 // pred_fallthru
          _
        // Predicated region
        $region29: #{forward.1} parent=11 // pred_check
          %p242 = pneg %p147
        $region30: #{forward.1} parent=11 // pred_check_branch
          %244 = sbr.rel (%p242) target = $region32
        $region31: #{forward.1} parent=11 // pred_region
          %s246 = ssub.s32 4096, 4096
          %247 = vsyncadd [#allocation3], %s246
          %s248 = sshll.u32 [#allocation2], 4
          %s249 = int_to_ptr.vmem [resolvable:$true] %s248
          %254 = dma.hbm_to_vmem [thread:$0]  %s5, 4096, %s249, [#allocation3], 128, 128, 8
        $region32: #{forward.1} parent=11 // pred_fallthru
          _
        // Predicated region
        $region33: #{forward.1} parent=11 // pred_check
          %p255 = pneg %p168
        $region34: #{forward.1} parent=11 // pred_check_branch
          %257 = sbr.rel (%p255) target = $region36
        $region35: #{forward.1} parent=11 // pred_region
          %s259 = ssub.s32 9216, 9216
          %260 = vsyncadd [#allocation5], %s259
          %s261 = sshll.u32 [#allocation4], 4
          %s262 = int_to_ptr.vmem [resolvable:$true] %s261
          %267 = dma.hbm_to_vmem [thread:$0]  %s6, 9216, %s262, [#allocation5], 128, 128, 8
        $region36: #{forward.1} parent=11 // pred_fallthru
          _
        // Predicated region
        $region37: #{forward.1} parent=11 // pred_check
          %p268 = pneg %p189
        $region38: #{forward.1} parent=11 // pred_check_branch
          %270 = sbr.rel (%p268) target = $region40
        $region39: #{forward.1} parent=11 // pred_region
          _
        $region40: #{forward.1} parent=11 // pred_fallthru
          _
      $region12: #{forward.1} parent=5 // pred_fallthru
        _
      %p271 = scmp.lt.s32.totalorder %s16, 2
      // Predicated region
      $region41: #{forward.1} parent=5 // pred_check
        %p272 = pneg %p271
      $region42: #{forward.1} parent=5 // pred_check_branch
        %274 = sbr.rel (%p272) target = $region44
      $region43: #{forward.1} parent=5 // pred_region
        // Predicated region
        $region45: #{forward.1} parent=43 // pred_check
          %p275 = pneg %p36
        $region46: #{forward.1} parent=43 // pred_check_branch
          %277 = sbr.rel (%p275) target = $region48
        $region47: #{forward.1} parent=43 // pred_region
          %s278 = smul.u32 2, %s16
          %p279 = scmp.lt.s32.totalorder %s278, 3
          %s280 = scalar_select %p279, %s278, 3
          %s281 = smul.addr %s280, 4
          %s282 = scalar_lea.vmem %s0, %s281
          %s283 = smul.u32 2, %s16
        $region48: #{forward.1} parent=43 // pred_fallthru
          _
      $region44: #{forward.1} parent=5 // pred_fallthru
        _
      %p284 = scmp.le.s32.totalorder 1, %s16
      %p285 = scmp.lt.s32.totalorder %s16, 3
      %p286 = pnand %p284, %p285
      %p287 = pneg %p286
      // Predicated region
      $region49: #{forward.1} parent=5 // pred_check
        _
      $region50: #{forward.1} parent=5 // pred_check_branch
        %289 = sbr.rel (%p286) target = $region52
      $region51: #{forward.1} parent=5 // pred_region
        %s290 = ssub.s32 %s16, 1
        // Predicated region
        $region53: #{forward.1} parent=51 // pred_check
          %p291 = pneg %p147
        $region54: #{forward.1} parent=51 // pred_check_branch
          %293 = sbr.rel (%p291) target = $region56
        $region55: #{forward.1} parent=51 // pred_region
          %294 = dma.done [#allocation3], 4096
        $region56: #{forward.1} parent=51 // pred_fallthru
          _
        // Predicated region
        $region57: #{forward.1} parent=51 // pred_check
          %p295 = pneg %p168
        $region58: #{forward.1} parent=51 // pred_check_branch
          %297 = sbr.rel (%p295) target = $region60
        $region59: #{forward.1} parent=51 // pred_region
          %298 = dma.done [#allocation5], 9216
        $region60: #{forward.1} parent=51 // pred_fallthru
          _
        %s299 = smul.u32 2, %s21
        %p300 = scmp.lt.s32.totalorder %s299, 3
        %s301 = scalar_select %p300, %s299, 3
        %s302 = smul.addr %s301, 4
        %s303 = scalar_lea.vmem %s0, %s302
        %p304 = pneg %p42
        %p305 = pneg %p39
        %p306 = pneg %p63
        %p307 = pneg %p60
        %p308 = pneg %p84
        %p309 = pneg %p81
        %p310 = pneg %p105
        %p311 = pneg %p102
        %p312 = pneg %p126
        %p313 = pneg %p123
        %p314 = pneg %p147
        %p315 = pneg %p144
        %p316 = pneg %p168
        %p317 = pneg %p165
        %p318 = pneg %p189
        %p319 = pneg %p186
        %p320 = pneg %p215
        %p321 = pneg %p212
        %s322 = sand.u32 %s202, 1
        %s323 = sand.u32 %s202, 1
        %s324 = smul.addr %s323, 32
        %s325 = scalar_lea.vmem [#allocation6], %s324
        %s326 = smul.u32 2, %s21
        %p327 = scmp.lt.s32.totalorder %s326, 3
        %s328 = scalar_select %p327, %s326, 3
        %s329 = smul.addr %s328, 4
        %s330 = scalar_lea.vmem %s0, %s329
        %s331 = smul.u32 2, %s21
        %s332 = smul.u32 2, %s21
        %v333 = vld [vmem:[%s1] sm:$0xff]
        %v334 = vld [vmem:[%s1 + $0x8] sm:$0xff]
        %v335 = vld [vmem:[%s330] sm:$0xff]
        %v337 = vcombine.high %v335, %v335
        %vm338 = vcmask 31744
        %v340 = vsel %vm338, %v333, 0
        %v343 = vsel %vm338, %v334, 0
        %vm345 = vcmask 1043456
        %v346 = vsel %vm345, %v335, 0
        %v348 = vsel %vm345, %v337, 0
        %350 = vmatprep.subr.mxu0 %v348
        %351 = vmatpush1.msra.mxu0 %v346
        %352 = vmatprep.subr.mxu0 0.0
        %353 = vmatpush1.msra.mxu0 0.0
        %354 = vmatprep.subr.mxu0 0.0
        %355 = vmatpush1.msra.mxu0 0.0
        %356 = vmatprep.subr.mxu0 0.0
        %357 = vmatpush1.msra.mxu0 0.0
        %358 = vmatprep.subr.mxu0 0.0
        %359 = vmatpush1.msra.mxu0 0.0
        %360 = vmatprep.subr.mxu0 0.0
        %361 = vmatpush1.msra.mxu0 0.0
        %362 = vmatprep.subr.mxu0 0.0
        %363 = vmatpush1.msra.mxu0 0.0
        %364 = vmatprep.subr.mxu0 0.0
        %365 = vmatpush1.msra.mxu0 0.0
        %366 = vmatprep.subr.mxu0 0.0
        %367 = vmatpush1.msra.mxu0 0.0
        %368 = vmatprep.subr.mxu0 0.0
        %369 = vmatpush1.msra.mxu0 0.0
        %370 = vmatprep.subr.mxu0 0.0
        %371 = vmatpush1.msra.mxu0 0.0
        %372 = vmatprep.subr.mxu0 0.0
        %373 = vmatpush1.msra.mxu0 0.0
        %374 = vmatprep.subr.mxu0 0.0
        %375 = vmatpush1.msra.mxu0 0.0
        %376 = vmatprep.subr.mxu0 0.0
        %377 = vmatpush1.msra.mxu0 0.0
        %378 = vmatprep.subr.mxu0 0.0
        %379 = vmatpush1.msra.mxu0 0.0
        %380 = vmatprep.subr.mxu0 0.0
        %381 = vmatpush1.msra.mxu0 0.0
        %382 = vmatprep.subr.mxu0 0.0
        %383 = vmatpush1.msra.mxu0 0.0
        %384 = vmatprep.subr.mxu0 0.0
        %385 = vmatpush1.msra.mxu0 0.0
        %386 = vmatprep.subr.mxu0 0.0
        %387 = vmatpush1.msra.mxu0 0.0
        %388 = vmatprep.subr.mxu0 0.0
        %389 = vmatpush1.msra.mxu0 0.0
        %390 = vmatprep.subr.mxu0 0.0
        %391 = vmatpush1.msra.mxu0 0.0
        %392 = vmatprep.subr.mxu0 0.0
        %393 = vmatpush1.msra.mxu0 0.0
        %394 = vmatprep.subr.mxu0 0.0
        %395 = vmatpush1.msra.mxu0 0.0
        %396 = vmatprep.subr.mxu0 0.0
        %397 = vmatpush1.msra.mxu0 0.0
        %398 = vmatprep.subr.mxu0 0.0
        %399 = vmatpush1.msra.mxu0 0.0
        %400 = vmatprep.subr.mxu0 0.0
        %401 = vmatpush1.msra.mxu0 0.0
        %402 = vmatprep.subr.mxu0 0.0
        %403 = vmatpush1.msra.mxu0 0.0
        %404 = vmatprep.subr.mxu0 0.0
        %405 = vmatpush1.msra.mxu0 0.0
        %406 = vmatprep.subr.mxu0 0.0
        %407 = vmatpush1.msra.mxu0 0.0
        %408 = vmatprep.subr.mxu0 0.0
        %409 = vmatpush1.msra.mxu0 0.0
        %410 = vmatprep.subr.mxu0 0.0
        %411 = vmatpush1.msra.mxu0 0.0
        %412 = vmatprep.subr.mxu0 0.0
        %413 = vmatpush1.msra.mxu0 0.0
        %414 = vmatprep.mubr.f32.mxu0 0.0
        %415 = vmatmul.mubr.f32.gmra.mrb[0].mxu0 %v340
        %v416 = vpop.f32.mrb[0].mxu0
        %v417 = vadd.f32 0.0, %v416
        %v418 = vpop.f32.mrb[0].mxu0
        %v419 = vadd.f32 0.0, %v418
        %420 = vmatprep.mubr.f32.mxu0 0.0
        %421 = vmatmul.mubr.f32.gmra.mrb[0].mxu0 %v343
        %v422 = vpop.f32.mrb[0].mxu0
        %v423 = vadd.f32 0.0, %v422
        %v424 = vpop.f32.mrb[0].mxu0
        %v425 = vadd.f32 0.0, %v424
        %426 = vdwg.mxu0
        %v427 = vld [vmem:[%s2] sm:$0xff]
        %429 = vset.pattern.permute.xlu0 0
        %430 = vperm.xlu0 %429, %v427
        %v431 = vpop.permute.xlu0 %430
        %v433 = vmul.f32 %v431, %v417
        %v434 = vmul.f32 %v431, %v419
        %435 = vset.pattern.permute.xlu0 1
        %436 = vperm.xlu0 %435, %v427
        %v437 = vpop.permute.xlu0 %436
        %v439 = vadd.f32 %v433, %v437
        %v440 = vadd.f32 %v434, %v437
        %v441 = vmax.f32 %v439, 0.0
        %v442 = vmax.f32 %v440, 0.0
        %443 = vset.pattern.permute.xlu0 2
        %444 = vperm.xlu0 %443, %v427
        %v445 = vpop.permute.xlu0 %444
        %v447 = vadd.f32 %v423, %v445
        %v448 = vadd.f32 %v425, %v445
        %v449 = vmax.f32 %v447, 0.0
        %v450 = vmax.f32 %v448, 0.0
        %v451 = vld [vmem:[%s4] sm:$0xff]
        %v452 = vld [vmem:[%s4 + $0x8] sm:$0xff]
        %v453 = vld [vmem:[%s4 + $0x10] sm:$0x1]
        %v454 = vld [vmem:[%s4 + $0x18] sm:$0x1]
        %v455 = vld [vmem:[#allocation2] sm:$0xff]
        %v456 = vld [vmem:[#allocation2 + $0x8] sm:$0xff]
        %v457 = vld [vmem:[#allocation2 + $0x10] sm:$0xff]
        %v458 = vld [vmem:[#allocation2 + $0x18] sm:$0xff]
        %v459 = vld [vmem:[#allocation2 + $0x20] sm:$0xff]
        %v460 = vld [vmem:[#allocation2 + $0x28] sm:$0xff]
        %v461 = vld [vmem:[#allocation2 + $0x30] sm:$0xff]
        %v462 = vld [vmem:[#allocation2 + $0x38] sm:$0xff]
        %v463 = vld [vmem:[#allocation2 + $0x40] sm:$0xff]
        %v464 = vld [vmem:[#allocation2 + $0x48] sm:$0xff]
        %v465 = vld [vmem:[#allocation2 + $0x50] sm:$0xff]
        %v466 = vld [vmem:[#allocation2 + $0x58] sm:$0xff]
        %v467 = vld [vmem:[#allocation2 + $0x60] sm:$0xff]
        %v468 = vld [vmem:[#allocation2 + $0x68] sm:$0xff]
        %v469 = vld [vmem:[#allocation2 + $0x70] sm:$0xff]
        %v470 = vld [vmem:[#allocation2 + $0x78] sm:$0xff]
        %v471 = vld [vmem:[#allocation2 + $0x80] sm:$0xff]
        %v472 = vld [vmem:[#allocation2 + $0x88] sm:$0xff]
        %v473 = vld [vmem:[#allocation2 + $0x90] sm:$0xff]
        %v474 = vld [vmem:[#allocation2 + $0x98] sm:$0xff]
        %v475 = vld [vmem:[#allocation2 + $0xa0] sm:$0xff]
        %v476 = vld [vmem:[#allocation2 + $0xa8] sm:$0xff]
        %v477 = vld [vmem:[#allocation2 + $0xb0] sm:$0xff]
        %v478 = vld [vmem:[#allocation2 + $0xb8] sm:$0xff]
        %v479 = vld [vmem:[#allocation2 + $0xc0] sm:$0xff]
        %v480 = vld [vmem:[#allocation2 + $0xc8] sm:$0xff]
        %v481 = vld [vmem:[#allocation2 + $0xd0] sm:$0xff]
        %v482 = vld [vmem:[#allocation2 + $0xd8] sm:$0xff]
        %v483 = vld [vmem:[#allocation2 + $0xe0] sm:$0xff]
        %v484 = vld [vmem:[#allocation2 + $0xe8] sm:$0xff]
        %v485 = vld [vmem:[#allocation2 + $0xf0] sm:$0xff]
        %v486 = vld [vmem:[#allocation2 + $0xf8] sm:$0xff]
        %487 = vmatprep.subr.mxu0 0.0
        %488 = vmatpush1.msra.mxu0 %v455
        %489 = vmatprep.subr.mxu0 0.0
        %490 = vmatpush1.msra.mxu0 %v456
        %491 = vmatprep.subr.mxu0 0.0
        %492 = vmatpush1.msra.mxu0 %v457
        %493 = vmatprep.subr.mxu0 0.0
        %494 = vmatpush1.msra.mxu0 %v458
        %495 = vmatprep.subr.mxu0 0.0
        %496 = vmatpush1.msra.mxu0 %v459
        %497 = vmatprep.subr.mxu0 0.0
        %498 = vmatpush1.msra.mxu0 %v460
        %499 = vmatprep.subr.mxu0 0.0
        %500 = vmatpush1.msra.mxu0 %v461
        %501 = vmatprep.subr.mxu0 0.0
        %502 = vmatpush1.msra.mxu0 %v462
        %503 = vmatprep.subr.mxu0 0.0
        %504 = vmatpush1.msra.mxu0 %v463
        %505 = vmatprep.subr.mxu0 0.0
        %506 = vmatpush1.msra.mxu0 %v464
        %507 = vmatprep.subr.mxu0 0.0
        %508 = vmatpush1.msra.mxu0 %v465
        %509 = vmatprep.subr.mxu0 0.0
        %510 = vmatpush1.msra.mxu0 %v466
        %511 = vmatprep.subr.mxu0 0.0
        %512 = vmatpush1.msra.mxu0 %v467
        %513 = vmatprep.subr.mxu0 0.0
        %514 = vmatpush1.msra.mxu0 %v468
        %515 = vmatprep.subr.mxu0 0.0
        %516 = vmatpush1.msra.mxu0 %v469
        %517 = vmatprep.subr.mxu0 0.0
        %518 = vmatpush1.msra.mxu0 %v470
        %519 = vmatprep.subr.mxu0 0.0
        %520 = vmatpush1.msra.mxu0 %v471
        %521 = vmatprep.subr.mxu0 0.0
        %522 = vmatpush1.msra.mxu0 %v472
        %523 = vmatprep.subr.mxu0 0.0
        %524 = vmatpush1.msra.mxu0 %v473
        %525 = vmatprep.subr.mxu0 0.0
        %526 = vmatpush1.msra.mxu0 %v474
        %527 = vmatprep.subr.mxu0 0.0
        %528 = vmatpush1.msra.mxu0 %v475
        %529 = vmatprep.subr.mxu0 0.0
        %530 = vmatpush1.msra.mxu0 %v476
        %531 = vmatprep.subr.mxu0 0.0
        %532 = vmatpush1.msra.mxu0 %v477
        %533 = vmatprep.subr.mxu0 0.0
        %534 = vmatpush1.msra.mxu0 %v478
        %535 = vmatprep.subr.mxu0 0.0
        %536 = vmatpush1.msra.mxu0 %v479
        %537 = vmatprep.subr.mxu0 0.0
        %538 = vmatpush1.msra.mxu0 %v480
        %539 = vmatprep.subr.mxu0 0.0
        %540 = vmatpush1.msra.mxu0 %v481
        %541 = vmatprep.subr.mxu0 0.0
        %542 = vmatpush1.msra.mxu0 %v482
        %543 = vmatprep.subr.mxu0 0.0
        %544 = vmatpush1.msra.mxu0 %v483
        %545 = vmatprep.subr.mxu0 0.0
        %546 = vmatpush1.msra.mxu0 %v484
        %547 = vmatprep.subr.mxu0 0.0
        %548 = vmatpush1.msra.mxu0 %v485
        %549 = vmatprep.subr.mxu0 0.0
        %550 = vmatpush1.msra.mxu0 %v486
        %551 = vmatprep.mubr.f32.mxu0 %v442
        %552 = vmatmul.mubr.f32.gmra.mrb[0].mxu0 %v441
        %v553 = vpop.f32.mrb[0].mxu0
        %v554 = vadd.f32 0.0, %v553
        %v555 = vpop.f32.mrb[0].mxu0
        %556 = vdwg.mxu0
        %v557 = vld [vmem:[#allocation4] sm:$0xff]
        %v558 = vld [vmem:[#allocation4 + $0x8] sm:$0xff]
        %v559 = vld [vmem:[#allocation4 + $0x10] sm:$0xff]
        %v560 = vld [vmem:[#allocation4 + $0x18] sm:$0xff]
        %v561 = vld [vmem:[#allocation4 + $0x20] sm:$0xff]
        %v562 = vld [vmem:[#allocation4 + $0x28] sm:$0xff]
        %v563 = vld [vmem:[#allocation4 + $0x30] sm:$0xff]
        %v564 = vld [vmem:[#allocation4 + $0x38] sm:$0xff]
        %vm565 = vcmask 523264
        %v567 = vsel %vm565, %v554, 0
        %569 = vmatprep.subr.mxu0 0.0
        %570 = vmatpush1.msra.mxu0 %v557
        %571 = vmatprep.subr.mxu0 0.0
        %572 = vmatpush1.msra.mxu0 %v558
        %573 = vmatprep.subr.mxu0 0.0
        %574 = vmatpush1.msra.mxu0 %v559
        %575 = vmatprep.subr.mxu0 0.0
        %576 = vmatpush1.msra.mxu0 %v560
        %577 = vmatprep.subr.mxu0 0.0
        %578 = vmatpush1.msra.mxu0 %v561
        %579 = vmatprep.subr.mxu0 0.0
        %580 = vmatpush1.msra.mxu0 %v562
        %581 = vmatprep.subr.mxu0 0.0
        %582 = vmatpush1.msra.mxu0 %v563
        %583 = vmatprep.subr.mxu0 0.0
        %584 = vmatpush1.msra.mxu0 %v564
        %585 = vmatprep.subr.mxu0 0.0
        %586 = vmatpush1.msra.mxu0 0.0
        %587 = vmatprep.subr.mxu0 0.0
        %588 = vmatpush1.msra.mxu0 0.0
        %589 = vmatprep.subr.mxu0 0.0
        %590 = vmatpush1.msra.mxu0 0.0
        %591 = vmatprep.subr.mxu0 0.0
        %592 = vmatpush1.msra.mxu0 0.0
        %593 = vmatprep.subr.mxu0 0.0
        %594 = vmatpush1.msra.mxu0 0.0
        %595 = vmatprep.subr.mxu0 0.0
        %596 = vmatpush1.msra.mxu0 0.0
        %597 = vmatprep.subr.mxu0 0.0
        %598 = vmatpush1.msra.mxu0 0.0
        %599 = vmatprep.subr.mxu0 0.0
        %600 = vmatpush1.msra.mxu0 0.0
        %601 = vmatprep.subr.mxu0 0.0
        %602 = vmatpush1.msra.mxu0 0.0
        %603 = vmatprep.subr.mxu0 0.0
        %604 = vmatpush1.msra.mxu0 0.0
        %605 = vmatprep.subr.mxu0 0.0
        %606 = vmatpush1.msra.mxu0 0.0
        %607 = vmatprep.subr.mxu0 0.0
        %608 = vmatpush1.msra.mxu0 0.0
        %609 = vmatprep.subr.mxu0 0.0
        %610 = vmatpush1.msra.mxu0 0.0
        %611 = vmatprep.subr.mxu0 0.0
        %612 = vmatpush1.msra.mxu0 0.0
        %613 = vmatprep.subr.mxu0 0.0
        %614 = vmatpush1.msra.mxu0 0.0
        %615 = vmatprep.subr.mxu0 0.0
        %616 = vmatpush1.msra.mxu0 0.0
        %617 = vmatprep.subr.mxu0 0.0
        %618 = vmatpush1.msra.mxu0 0.0
        %619 = vmatprep.subr.mxu0 0.0
        %620 = vmatpush1.msra.mxu0 0.0
        %621 = vmatprep.subr.mxu0 0.0
        %622 = vmatpush1.msra.mxu0 0.0
        %623 = vmatprep.subr.mxu0 0.0
        %624 = vmatpush1.msra.mxu0 0.0
        %625 = vmatprep.subr.mxu0 0.0
        %626 = vmatpush1.msra.mxu0 0.0
        %627 = vmatprep.subr.mxu0 0.0
        %628 = vmatpush1.msra.mxu0 0.0
        %629 = vmatprep.subr.mxu0 0.0
        %630 = vmatpush1.msra.mxu0 0.0
        %631 = vmatprep.subr.mxu0 0.0
        %632 = vmatpush1.msra.mxu0 0.0
        %633 = vmatprep.mubr.f32.mxu0 0.0
        %634 = vmatmul.mubr.f32.gmra.mrb[0].mxu0 %v567
        %v635 = vpop.f32.mrb[0].mxu0
        %v636 = vadd.f32 0.0, %v635
        %v637 = vpop.f32.mrb[0].mxu0
        %638 = vdwg.mxu0
        %s639 = scalar_lea.vmem [#allocation4], 64
        %v640 = vld [vmem:[%s639] sm:$0xff]
        %v641 = vld [vmem:[%s639 + $0x8] sm:$0xff]
        %v642 = vld [vmem:[%s639 + $0x10] sm:$0xff]
        %v643 = vld [vmem:[%s639 + $0x18] sm:$0xff]
        %v644 = vld [vmem:[%s639 + $0x20] sm:$0xff]
        %v645 = vld [vmem:[%s639 + $0x28] sm:$0xff]
        %v646 = vld [vmem:[%s639 + $0x30] sm:$0xff]
        %v647 = vld [vmem:[%s639 + $0x38] sm:$0xff]
        %648 = vmatprep.subr.mxu0 0.0
        %649 = vmatpush1.msra.mxu0 %v640
        %650 = vmatprep.subr.mxu0 0.0
        %651 = vmatpush1.msra.mxu0 %v641
        %652 = vmatprep.subr.mxu0 0.0
        %653 = vmatpush1.msra.mxu0 %v642
        %654 = vmatprep.subr.mxu0 0.0
        %655 = vmatpush1.msra.mxu0 %v643
        %656 = vmatprep.subr.mxu0 0.0
        %657 = vmatpush1.msra.mxu0 %v644
        %658 = vmatprep.subr.mxu0 0.0
        %659 = vmatpush1.msra.mxu0 %v645
        %660 = vmatprep.subr.mxu0 0.0
        %661 = vmatpush1.msra.mxu0 %v646
        %662 = vmatprep.subr.mxu0 0.0
        %663 = vmatpush1.msra.mxu0 %v647
        %664 = vmatprep.subr.mxu0 0.0
        %665 = vmatpush1.msra.mxu0 0.0
        %666 = vmatprep.subr.mxu0 0.0
        %667 = vmatpush1.msra.mxu0 0.0
        %668 = vmatprep.subr.mxu0 0.0
        %669 = vmatpush1.msra.mxu0 0.0
        %670 = vmatprep.subr.mxu0 0.0
        %671 = vmatpush1.msra.mxu0 0.0
        %672 = vmatprep.subr.mxu0 0.0
        %673 = vmatpush1.msra.mxu0 0.0
        %674 = vmatprep.subr.mxu0 0.0
        %675 = vmatpush1.msra.mxu0 0.0
        %676 = vmatprep.subr.mxu0 0.0
        %677 = vmatpush1.msra.mxu0 0.0
        %678 = vmatprep.subr.mxu0 0.0
        %679 = vmatpush1.msra.mxu0 0.0
        %680 = vmatprep.subr.mxu0 0.0
        %681 = vmatpush1.msra.mxu0 0.0
        %682 = vmatprep.subr.mxu0 0.0
        %683 = vmatpush1.msra.mxu0 0.0
        %684 = vmatprep.subr.mxu0 0.0
        %685 = vmatpush1.msra.mxu0 0.0
        %686 = vmatprep.subr.mxu0 0.0
        %687 = vmatpush1.msra.mxu0 0.0
        %688 = vmatprep.subr.mxu0 0.0
        %689 = vmatpush1.msra.mxu0 0.0
        %690 = vmatprep.subr.mxu0 0.0
        %691 = vmatpush1.msra.mxu0 0.0
        %692 = vmatprep.subr.mxu0 0.0
        %693 = vmatpush1.msra.mxu0 0.0
        %694 = vmatprep.subr.mxu0 0.0
        %695 = vmatpush1.msra.mxu0 0.0
        %696 = vmatprep.subr.mxu0 0.0
        %697 = vmatpush1.msra.mxu0 0.0
        %698 = vmatprep.subr.mxu0 0.0
        %699 = vmatpush1.msra.mxu0 0.0
        %700 = vmatprep.subr.mxu0 0.0
        %701 = vmatpush1.msra.mxu0 0.0
        %702 = vmatprep.subr.mxu0 0.0
        %703 = vmatpush1.msra.mxu0 0.0
        %704 = vmatprep.subr.mxu0 0.0
        %705 = vmatpush1.msra.mxu0 0.0
        %706 = vmatprep.subr.mxu0 0.0
        %707 = vmatpush1.msra.mxu0 0.0
        %708 = vmatprep.subr.mxu0 0.0
        %709 = vmatpush1.msra.mxu0 0.0
        %710 = vmatprep.subr.mxu0 0.0
        %711 = vmatpush1.msra.mxu0 0.0
        %712 = vmatprep.mubr.f32.mxu0 0.0
        %713 = vmatmul.mubr.f32.gmra.mrb[0].mxu0 %v567
        %v714 = vpop.f32.mrb[0].mxu0
        %v715 = vadd.f32 0.0, %v714
        %v716 = vpop.f32.mrb[0].mxu0
        %717 = vdwg.mxu0
        %s718 = scalar_lea.vmem [#allocation4], 128
        %v719 = vld [vmem:[%s718] sm:$0xff]
        %v720 = vld [vmem:[%s718 + $0x8] sm:$0xff]
        %v721 = vld [vmem:[%s718 + $0x10] sm:$0xff]
        %v722 = vld [vmem:[%s718 + $0x18] sm:$0xff]
        %v723 = vld [vmem:[%s718 + $0x20] sm:$0xff]
        %v724 = vld [vmem:[%s718 + $0x28] sm:$0xff]
        %v725 = vld [vmem:[%s718 + $0x30] sm:$0xff]
        %v726 = vld [vmem:[%s718 + $0x38] sm:$0xff]
        %727 = vmatprep.subr.mxu0 0.0
        %728 = vmatpush1.msra.mxu0 %v719
        %729 = vmatprep.subr.mxu0 0.0
        %730 = vmatpush1.msra.mxu0 %v720
        %731 = vmatprep.subr.mxu0 0.0
        %732 = vmatpush1.msra.mxu0 %v721
        %733 = vmatprep.subr.mxu0 0.0
        %734 = vmatpush1.msra.mxu0 %v722
        %735 = vmatprep.subr.mxu0 0.0
        %736 = vmatpush1.msra.mxu0 %v723
        %737 = vmatprep.subr.mxu0 0.0
        %738 = vmatpush1.msra.mxu0 %v724
        %739 = vmatprep.subr.mxu0 0.0
        %740 = vmatpush1.msra.mxu0 %v725
        %741 = vmatprep.subr.mxu0 0.0
        %742 = vmatpush1.msra.mxu0 %v726
        %743 = vmatprep.subr.mxu0 0.0
        %744 = vmatpush1.msra.mxu0 0.0
        %745 = vmatprep.subr.mxu0 0.0
        %746 = vmatpush1.msra.mxu0 0.0
        %747 = vmatprep.subr.mxu0 0.0
        %748 = vmatpush1.msra.mxu0 0.0
        %749 = vmatprep.subr.mxu0 0.0
        %750 = vmatpush1.msra.mxu0 0.0
        %751 = vmatprep.subr.mxu0 0.0
        %752 = vmatpush1.msra.mxu0 0.0
        %753 = vmatprep.subr.mxu0 0.0
        %754 = vmatpush1.msra.mxu0 0.0
        %755 = vmatprep.subr.mxu0 0.0
        %756 = vmatpush1.msra.mxu0 0.0
        %757 = vmatprep.subr.mxu0 0.0
        %758 = vmatpush1.msra.mxu0 0.0
        %759 = vmatprep.subr.mxu0 0.0
        %760 = vmatpush1.msra.mxu0 0.0
        %761 = vmatprep.subr.mxu0 0.0
        %762 = vmatpush1.msra.mxu0 0.0
        %763 = vmatprep.subr.mxu0 0.0
        %764 = vmatpush1.msra.mxu0 0.0
        %765 = vmatprep.subr.mxu0 0.0
        %766 = vmatpush1.msra.mxu0 0.0
        %767 = vmatprep.subr.mxu0 0.0
        %768 = vmatpush1.msra.mxu0 0.0
        %769 = vmatprep.subr.mxu0 0.0
        %770 = vmatpush1.msra.mxu0 0.0
        %771 = vmatprep.subr.mxu0 0.0
        %772 = vmatpush1.msra.mxu0 0.0
        %773 = vmatprep.subr.mxu0 0.0
        %774 = vmatpush1.msra.mxu0 0.0
        %775 = vmatprep.subr.mxu0 0.0
        %776 = vmatpush1.msra.mxu0 0.0
        %777 = vmatprep.subr.mxu0 0.0
        %778 = vmatpush1.msra.mxu0 0.0
        %779 = vmatprep.subr.mxu0 0.0
        %780 = vmatpush1.msra.mxu0 0.0
        %781 = vmatprep.subr.mxu0 0.0
        %782 = vmatpush1.msra.mxu0 0.0
        %783 = vmatprep.subr.mxu0 0.0
        %784 = vmatpush1.msra.mxu0 0.0
        %785 = vmatprep.subr.mxu0 0.0
        %786 = vmatpush1.msra.mxu0 0.0
        %787 = vmatprep.subr.mxu0 0.0
        %788 = vmatpush1.msra.mxu0 0.0
        %789 = vmatprep.subr.mxu0 0.0
        %790 = vmatpush1.msra.mxu0 0.0
        %791 = vmatprep.mubr.f32.mxu0 0.0
        %792 = vmatmul.mubr.f32.gmra.mrb[0].mxu0 %v567
        %v793 = vpop.f32.mrb[0].mxu0
        %v794 = vadd.f32 0.0, %v793
        %v795 = vpop.f32.mrb[0].mxu0
        %796 = vdwg.mxu0
        %s797 = scalar_lea.vmem [#allocation4], 192
        %v798 = vld [vmem:[%s797] sm:$0xff]
        %v799 = vld [vmem:[%s797 + $0x8] sm:$0xff]
        %v800 = vld [vmem:[%s797 + $0x10] sm:$0xff]
        %v801 = vld [vmem:[%s797 + $0x18] sm:$0xff]
        %v802 = vld [vmem:[%s797 + $0x20] sm:$0xff]
        %v803 = vld [vmem:[%s797 + $0x28] sm:$0xff]
        %v804 = vld [vmem:[%s797 + $0x30] sm:$0xff]
        %v805 = vld [vmem:[%s797 + $0x38] sm:$0xff]
        %806 = vmatprep.subr.mxu0 0.0
        %807 = vmatpush1.msra.mxu0 %v798
        %808 = vmatprep.subr.mxu0 0.0
        %809 = vmatpush1.msra.mxu0 %v799
        %810 = vmatprep.subr.mxu0 0.0
        %811 = vmatpush1.msra.mxu0 %v800
        %812 = vmatprep.subr.mxu0 0.0
        %813 = vmatpush1.msra.mxu0 %v801
        %814 = vmatprep.subr.mxu0 0.0
        %815 = vmatpush1.msra.mxu0 %v802
        %816 = vmatprep.subr.mxu0 0.0
        %817 = vmatpush1.msra.mxu0 %v803
        %818 = vmatprep.subr.mxu0 0.0
        %819 = vmatpush1.msra.mxu0 %v804
        %820 = vmatprep.subr.mxu0 0.0
        %821 = vmatpush1.msra.mxu0 %v805
        %822 = vmatprep.subr.mxu0 0.0
        %823 = vmatpush1.msra.mxu0 0.0
        %824 = vmatprep.subr.mxu0 0.0
        %825 = vmatpush1.msra.mxu0 0.0
        %826 = vmatprep.subr.mxu0 0.0
        %827 = vmatpush1.msra.mxu0 0.0
        %828 = vmatprep.subr.mxu0 0.0
        %829 = vmatpush1.msra.mxu0 0.0
        %830 = vmatprep.subr.mxu0 0.0
        %831 = vmatpush1.msra.mxu0 0.0
        %832 = vmatprep.subr.mxu0 0.0
        %833 = vmatpush1.msra.mxu0 0.0
        %834 = vmatprep.subr.mxu0 0.0
        %835 = vmatpush1.msra.mxu0 0.0
        %836 = vmatprep.subr.mxu0 0.0
        %837 = vmatpush1.msra.mxu0 0.0
        %838 = vmatprep.subr.mxu0 0.0
        %839 = vmatpush1.msra.mxu0 0.0
        %840 = vmatprep.subr.mxu0 0.0
        %841 = vmatpush1.msra.mxu0 0.0
        %842 = vmatprep.subr.mxu0 0.0
        %843 = vmatpush1.msra.mxu0 0.0
        %844 = vmatprep.subr.mxu0 0.0
        %845 = vmatpush1.msra.mxu0 0.0
        %846 = vmatprep.subr.mxu0 0.0
        %847 = vmatpush1.msra.mxu0 0.0
        %848 = vmatprep.subr.mxu0 0.0
        %849 = vmatpush1.msra.mxu0 0.0
        %850 = vmatprep.subr.mxu0 0.0
        %851 = vmatpush1.msra.mxu0 0.0
        %852 = vmatprep.subr.mxu0 0.0
        %853 = vmatpush1.msra.mxu0 0.0
        %854 = vmatprep.subr.mxu0 0.0
        %855 = vmatpush1.msra.mxu0 0.0
        %856 = vmatprep.subr.mxu0 0.0
        %857 = vmatpush1.msra.mxu0 0.0
        %858 = vmatprep.subr.mxu0 0.0
        %859 = vmatpush1.msra.mxu0 0.0
        %860 = vmatprep.subr.mxu0 0.0
        %861 = vmatpush1.msra.mxu0 0.0
        %862 = vmatprep.subr.mxu0 0.0
        %863 = vmatpush1.msra.mxu0 0.0
        %864 = vmatprep.subr.mxu0 0.0
        %865 = vmatpush1.msra.mxu0 0.0
        %866 = vmatprep.subr.mxu0 0.0
        %867 = vmatpush1.msra.mxu0 0.0
        %868 = vmatprep.subr.mxu0 0.0
        %869 = vmatpush1.msra.mxu0 0.0
        %870 = vmatprep.mubr.f32.mxu0 0.0
        %871 = vmatmul.mubr.f32.gmra.mrb[0].mxu0 %v567
        %v872 = vpop.f32.mrb[0].mxu0
        %v873 = vadd.f32 0.0, %v872
        %v874 = vpop.f32.mrb[0].mxu0
        %875 = vdwg.mxu0
        %s876 = scalar_lea.vmem [#allocation4], 256
        %v877 = vld [vmem:[%s876] sm:$0xff]
        %v878 = vld [vmem:[%s876 + $0x8] sm:$0xff]
        %v879 = vld [vmem:[%s876 + $0x10] sm:$0xff]
        %v880 = vld [vmem:[%s876 + $0x18] sm:$0xff]
        %v881 = vld [vmem:[%s876 + $0x20] sm:$0xff]
        %v882 = vld [vmem:[%s876 + $0x28] sm:$0xff]
        %v883 = vld [vmem:[%s876 + $0x30] sm:$0xff]
        %v884 = vld [vmem:[%s876 + $0x38] sm:$0xff]
        %885 = vmatprep.subr.mxu0 0.0
        %886 = vmatpush1.msra.mxu0 %v877
        %887 = vmatprep.subr.mxu0 0.0
        %888 = vmatpush1.msra.mxu0 %v878
        %889 = vmatprep.subr.mxu0 0.0
        %890 = vmatpush1.msra.mxu0 %v879
        %891 = vmatprep.subr.mxu0 0.0
        %892 = vmatpush1.msra.mxu0 %v880
        %893 = vmatprep.subr.mxu0 0.0
        %894 = vmatpush1.msra.mxu0 %v881
        %895 = vmatprep.subr.mxu0 0.0
        %896 = vmatpush1.msra.mxu0 %v882
        %897 = vmatprep.subr.mxu0 0.0
        %898 = vmatpush1.msra.mxu0 %v883
        %899 = vmatprep.subr.mxu0 0.0
        %900 = vmatpush1.msra.mxu0 %v884
        %901 = vmatprep.subr.mxu0 0.0
        %902 = vmatpush1.msra.mxu0 0.0
        %903 = vmatprep.subr.mxu0 0.0
        %904 = vmatpush1.msra.mxu0 0.0
        %905 = vmatprep.subr.mxu0 0.0
        %906 = vmatpush1.msra.mxu0 0.0
        %907 = vmatprep.subr.mxu0 0.0
        %908 = vmatpush1.msra.mxu0 0.0
        %909 = vmatprep.subr.mxu0 0.0
        %910 = vmatpush1.msra.mxu0 0.0
        %911 = vmatprep.subr.mxu0 0.0
        %912 = vmatpush1.msra.mxu0 0.0
        %913 = vmatprep.subr.mxu0 0.0
        %914 = vmatpush1.msra.mxu0 0.0
        %915 = vmatprep.subr.mxu0 0.0
        %916 = vmatpush1.msra.mxu0 0.0
        %917 = vmatprep.subr.mxu0 0.0
        %918 = vmatpush1.msra.mxu0 0.0
        %919 = vmatprep.subr.mxu0 0.0
        %920 = vmatpush1.msra.mxu0 0.0
        %921 = vmatprep.subr.mxu0 0.0
        %922 = vmatpush1.msra.mxu0 0.0
        %923 = vmatprep.subr.mxu0 0.0
        %924 = vmatpush1.msra.mxu0 0.0
        %925 = vmatprep.subr.mxu0 0.0
        %926 = vmatpush1.msra.mxu0 0.0
        %927 = vmatprep.subr.mxu0 0.0
        %928 = vmatpush1.msra.mxu0 0.0
        %929 = vmatprep.subr.mxu0 0.0
        %930 = vmatpush1.msra.mxu0 0.0
        %931 = vmatprep.subr.mxu0 0.0
        %932 = vmatpush1.msra.mxu0 0.0
        %933 = vmatprep.subr.mxu0 0.0
        %934 = vmatpush1.msra.mxu0 0.0
        %935 = vmatprep.subr.mxu0 0.0
        %936 = vmatpush1.msra.mxu0 0.0
        %937 = vmatprep.subr.mxu0 0.0
        %938 = vmatpush1.msra.mxu0 0.0
        %939 = vmatprep.subr.mxu0 0.0
        %940 = vmatpush1.msra.mxu0 0.0
        %941 = vmatprep.subr.mxu0 0.0
        %942 = vmatpush1.msra.mxu0 0.0
        %943 = vmatprep.subr.mxu0 0.0
        %944 = vmatpush1.msra.mxu0 0.0
        %945 = vmatprep.subr.mxu0 0.0
        %946 = vmatpush1.msra.mxu0 0.0
        %947 = vmatprep.subr.mxu0 0.0
        %948 = vmatpush1.msra.mxu0 0.0
        %949 = vmatprep.mubr.f32.mxu0 0.0
        %950 = vmatmul.mubr.f32.gmra.mrb[0].mxu0 %v567
        %v951 = vpop.f32.mrb[0].mxu0
        %v952 = vadd.f32 0.0, %v951
        %v953 = vpop.f32.mrb[0].mxu0
        %954 = vdwg.mxu0
        %s955 = scalar_lea.vmem [#allocation4], 320
        %v956 = vld [vmem:[%s955] sm:$0xff]
        %v957 = vld [vmem:[%s955 + $0x8] sm:$0xff]
        %v958 = vld [vmem:[%s955 + $0x10] sm:$0xff]
        %v959 = vld [vmem:[%s955 + $0x18] sm:$0xff]
        %v960 = vld [vmem:[%s955 + $0x20] sm:$0xff]
        %v961 = vld [vmem:[%s955 + $0x28] sm:$0xff]
        %v962 = vld [vmem:[%s955 + $0x30] sm:$0xff]
        %v963 = vld [vmem:[%s955 + $0x38] sm:$0xff]
        %964 = vmatprep.subr.mxu0 0.0
        %965 = vmatpush1.msra.mxu0 %v956
        %966 = vmatprep.subr.mxu0 0.0
        %967 = vmatpush1.msra.mxu0 %v957
        %968 = vmatprep.subr.mxu0 0.0
        %969 = vmatpush1.msra.mxu0 %v958
        %970 = vmatprep.subr.mxu0 0.0
        %971 = vmatpush1.msra.mxu0 %v959
        %972 = vmatprep.subr.mxu0 0.0
        %973 = vmatpush1.msra.mxu0 %v960
        %974 = vmatprep.subr.mxu0 0.0
        %975 = vmatpush1.msra.mxu0 %v961
        %976 = vmatprep.subr.mxu0 0.0
        %977 = vmatpush1.msra.mxu0 %v962
        %978 = vmatprep.subr.mxu0 0.0
        %979 = vmatpush1.msra.mxu0 %v963
        %980 = vmatprep.subr.mxu0 0.0
        %981 = vmatpush1.msra.mxu0 0.0
        %982 = vmatprep.subr.mxu0 0.0
        %983 = vmatpush1.msra.mxu0 0.0
        %984 = vmatprep.subr.mxu0 0.0
        %985 = vmatpush1.msra.mxu0 0.0
        %986 = vmatprep.subr.mxu0 0.0
        %987 = vmatpush1.msra.mxu0 0.0
        %988 = vmatprep.subr.mxu0 0.0
        %989 = vmatpush1.msra.mxu0 0.0
        %990 = vmatprep.subr.mxu0 0.0
        %991 = vmatpush1.msra.mxu0 0.0
        %992 = vmatprep.subr.mxu0 0.0
        %993 = vmatpush1.msra.mxu0 0.0
        %994 = vmatprep.subr.mxu0 0.0
        %995 = vmatpush1.msra.mxu0 0.0
        %996 = vmatprep.subr.mxu0 0.0
        %997 = vmatpush1.msra.mxu0 0.0
        %998 = vmatprep.subr.mxu0 0.0
        %999 = vmatpush1.msra.mxu0 0.0
        %1000 = vmatprep.subr.mxu0 0.0
        %1001 = vmatpush1.msra.mxu0 0.0
        %1002 = vmatprep.subr.mxu0 0.0
        %1003 = vmatpush1.msra.mxu0 0.0
        %1004 = vmatprep.subr.mxu0 0.0
        %1005 = vmatpush1.msra.mxu0 0.0
        %1006 = vmatprep.subr.mxu0 0.0
        %1007 = vmatpush1.msra.mxu0 0.0
        %1008 = vmatprep.subr.mxu0 0.0
        %1009 = vmatpush1.msra.mxu0 0.0
        %1010 = vmatprep.subr.mxu0 0.0
        %1011 = vmatpush1.msra.mxu0 0.0
        %1012 = vmatprep.subr.mxu0 0.0
        %1013 = vmatpush1.msra.mxu0 0.0
        %1014 = vmatprep.subr.mxu0 0.0
        %1015 = vmatpush1.msra.mxu0 0.0
        %1016 = vmatprep.subr.mxu0 0.0
        %1017 = vmatpush1.msra.mxu0 0.0
        %1018 = vmatprep.subr.mxu0 0.0
        %1019 = vmatpush1.msra.mxu0 0.0
        %1020 = vmatprep.subr.mxu0 0.0
        %1021 = vmatpush1.msra.mxu0 0.0
        %1022 = vmatprep.subr.mxu0 0.0
        %1023 = vmatpush1.msra.mxu0 0.0
        %1024 = vmatprep.subr.mxu0 0.0
        %1025 = vmatpush1.msra.mxu0 0.0
        %1026 = vmatprep.subr.mxu0 0.0
        %1027 = vmatpush1.msra.mxu0 0.0
        %1028 = vmatprep.mubr.f32.mxu0 0.0
        %1029 = vmatmul.mubr.f32.gmra.mrb[0].mxu0 %v567
        %v1030 = vpop.f32.mrb[0].mxu0
        %v1031 = vadd.f32 0.0, %v1030
        %v1032 = vpop.f32.mrb[0].mxu0
        %1033 = vdwg.mxu0
        %s1034 = scalar_lea.vmem [#allocation4], 384
        %v1035 = vld [vmem:[%s1034] sm:$0xff]
        %v1036 = vld [vmem:[%s1034 + $0x8] sm:$0xff]
        %v1037 = vld [vmem:[%s1034 + $0x10] sm:$0xff]
        %v1038 = vld [vmem:[%s1034 + $0x18] sm:$0xff]
        %v1039 = vld [vmem:[%s1034 + $0x20] sm:$0xff]
        %v1040 = vld [vmem:[%s1034 + $0x28] sm:$0xff]
        %v1041 = vld [vmem:[%s1034 + $0x30] sm:$0xff]
        %v1042 = vld [vmem:[%s1034 + $0x38] sm:$0xff]
        %1043 = vmatprep.subr.mxu0 0.0
        %1044 = vmatpush1.msra.mxu0 %v1035
        %1045 = vmatprep.subr.mxu0 0.0
        %1046 = vmatpush1.msra.mxu0 %v1036
        %1047 = vmatprep.subr.mxu0 0.0
        %1048 = vmatpush1.msra.mxu0 %v1037
        %1049 = vmatprep.subr.mxu0 0.0
        %1050 = vmatpush1.msra.mxu0 %v1038
        %1051 = vmatprep.subr.mxu0 0.0
        %1052 = vmatpush1.msra.mxu0 %v1039
        %1053 = vmatprep.subr.mxu0 0.0
        %1054 = vmatpush1.msra.mxu0 %v1040
        %1055 = vmatprep.subr.mxu0 0.0
        %1056 = vmatpush1.msra.mxu0 %v1041
        %1057 = vmatprep.subr.mxu0 0.0
        %1058 = vmatpush1.msra.mxu0 %v1042
        %1059 = vmatprep.subr.mxu0 0.0
        %1060 = vmatpush1.msra.mxu0 0.0
        %1061 = vmatprep.subr.mxu0 0.0
        %1062 = vmatpush1.msra.mxu0 0.0
        %1063 = vmatprep.subr.mxu0 0.0
        %1064 = vmatpush1.msra.mxu0 0.0
        %1065 = vmatprep.subr.mxu0 0.0
        %1066 = vmatpush1.msra.mxu0 0.0
        %1067 = vmatprep.subr.mxu0 0.0
        %1068 = vmatpush1.msra.mxu0 0.0
        %1069 = vmatprep.subr.mxu0 0.0
        %1070 = vmatpush1.msra.mxu0 0.0
        %1071 = vmatprep.subr.mxu0 0.0
        %1072 = vmatpush1.msra.mxu0 0.0
        %1073 = vmatprep.subr.mxu0 0.0
        %1074 = vmatpush1.msra.mxu0 0.0
        %1075 = vmatprep.subr.mxu0 0.0
        %1076 = vmatpush1.msra.mxu0 0.0
        %1077 = vmatprep.subr.mxu0 0.0
        %1078 = vmatpush1.msra.mxu0 0.0
        %1079 = vmatprep.subr.mxu0 0.0
        %1080 = vmatpush1.msra.mxu0 0.0
        %1081 = vmatprep.subr.mxu0 0.0
        %1082 = vmatpush1.msra.mxu0 0.0
        %1083 = vmatprep.subr.mxu0 0.0
        %1084 = vmatpush1.msra.mxu0 0.0
        %1085 = vmatprep.subr.mxu0 0.0
        %1086 = vmatpush1.msra.mxu0 0.0
        %1087 = vmatprep.subr.mxu0 0.0
        %1088 = vmatpush1.msra.mxu0 0.0
        %1089 = vmatprep.subr.mxu0 0.0
        %1090 = vmatpush1.msra.mxu0 0.0
        %1091 = vmatprep.subr.mxu0 0.0
        %1092 = vmatpush1.msra.mxu0 0.0
        %1093 = vmatprep.subr.mxu0 0.0
        %1094 = vmatpush1.msra.mxu0 0.0
        %1095 = vmatprep.subr.mxu0 0.0
        %1096 = vmatpush1.msra.mxu0 0.0
        %1097 = vmatprep.subr.mxu0 0.0
        %1098 = vmatpush1.msra.mxu0 0.0
        %1099 = vmatprep.subr.mxu0 0.0
        %1100 = vmatpush1.msra.mxu0 0.0
        %1101 = vmatprep.subr.mxu0 0.0
        %1102 = vmatpush1.msra.mxu0 0.0
        %1103 = vmatprep.subr.mxu0 0.0
        %1104 = vmatpush1.msra.mxu0 0.0
        %1105 = vmatprep.subr.mxu0 0.0
        %1106 = vmatpush1.msra.mxu0 0.0
        %1107 = vmatprep.mubr.f32.mxu0 0.0
        %1108 = vmatmul.mubr.f32.gmra.mrb[0].mxu0 %v567
        %v1109 = vpop.f32.mrb[0].mxu0
        %v1110 = vadd.f32 0.0, %v1109
        %v1111 = vpop.f32.mrb[0].mxu0
        %1112 = vdwg.mxu0
        %s1113 = scalar_lea.vmem [#allocation4], 448
        %v1114 = vld [vmem:[%s1113] sm:$0xff]
        %v1115 = vld [vmem:[%s1113 + $0x8] sm:$0xff]
        %v1116 = vld [vmem:[%s1113 + $0x10] sm:$0xff]
        %v1117 = vld [vmem:[%s1113 + $0x18] sm:$0xff]
        %v1118 = vld [vmem:[%s1113 + $0x20] sm:$0xff]
        %v1119 = vld [vmem:[%s1113 + $0x28] sm:$0xff]
        %v1120 = vld [vmem:[%s1113 + $0x30] sm:$0xff]
        %v1121 = vld [vmem:[%s1113 + $0x38] sm:$0xff]
        %1122 = vmatprep.subr.mxu0 0.0
        %1123 = vmatpush1.msra.mxu0 %v1114
        %1124 = vmatprep.subr.mxu0 0.0
        %1125 = vmatpush1.msra.mxu0 %v1115
        %1126 = vmatprep.subr.mxu0 0.0
        %1127 = vmatpush1.msra.mxu0 %v1116
        %1128 = vmatprep.subr.mxu0 0.0
        %1129 = vmatpush1.msra.mxu0 %v1117
        %1130 = vmatprep.subr.mxu0 0.0
        %1131 = vmatpush1.msra.mxu0 %v1118
        %1132 = vmatprep.subr.mxu0 0.0
        %1133 = vmatpush1.msra.mxu0 %v1119
        %1134 = vmatprep.subr.mxu0 0.0
        %1135 = vmatpush1.msra.mxu0 %v1120
        %1136 = vmatprep.subr.mxu0 0.0
        %1137 = vmatpush1.msra.mxu0 %v1121
        %1138 = vmatprep.subr.mxu0 0.0
        %1139 = vmatpush1.msra.mxu0 0.0
        %1140 = vmatprep.subr.mxu0 0.0
        %1141 = vmatpush1.msra.mxu0 0.0
        %1142 = vmatprep.subr.mxu0 0.0
        %1143 = vmatpush1.msra.mxu0 0.0
        %1144 = vmatprep.subr.mxu0 0.0
        %1145 = vmatpush1.msra.mxu0 0.0
        %1146 = vmatprep.subr.mxu0 0.0
        %1147 = vmatpush1.msra.mxu0 0.0
        %1148 = vmatprep.subr.mxu0 0.0
        %1149 = vmatpush1.msra.mxu0 0.0
        %1150 = vmatprep.subr.mxu0 0.0
        %1151 = vmatpush1.msra.mxu0 0.0
        %1152 = vmatprep.subr.mxu0 0.0
        %1153 = vmatpush1.msra.mxu0 0.0
        %1154 = vmatprep.subr.mxu0 0.0
        %1155 = vmatpush1.msra.mxu0 0.0
        %1156 = vmatprep.subr.mxu0 0.0
        %1157 = vmatpush1.msra.mxu0 0.0
        %1158 = vmatprep.subr.mxu0 0.0
        %1159 = vmatpush1.msra.mxu0 0.0
        %1160 = vmatprep.subr.mxu0 0.0
        %1161 = vmatpush1.msra.mxu0 0.0
        %1162 = vmatprep.subr.mxu0 0.0
        %1163 = vmatpush1.msra.mxu0 0.0
        %1164 = vmatprep.subr.mxu0 0.0
        %1165 = vmatpush1.msra.mxu0 0.0
        %1166 = vmatprep.subr.mxu0 0.0
        %1167 = vmatpush1.msra.mxu0 0.0
        %1168 = vmatprep.subr.mxu0 0.0
        %1169 = vmatpush1.msra.mxu0 0.0
        %1170 = vmatprep.subr.mxu0 0.0
        %1171 = vmatpush1.msra.mxu0 0.0
        %1172 = vmatprep.subr.mxu0 0.0
        %1173 = vmatpush1.msra.mxu0 0.0
        %1174 = vmatprep.subr.mxu0 0.0
        %1175 = vmatpush1.msra.mxu0 0.0
        %1176 = vmatprep.subr.mxu0 0.0
        %1177 = vmatpush1.msra.mxu0 0.0
        %1178 = vmatprep.subr.mxu0 0.0
        %1179 = vmatpush1.msra.mxu0 0.0
        %1180 = vmatprep.subr.mxu0 0.0
        %1181 = vmatpush1.msra.mxu0 0.0
        %1182 = vmatprep.subr.mxu0 0.0
        %1183 = vmatpush1.msra.mxu0 0.0
        %1184 = vmatprep.subr.mxu0 0.0
        %1185 = vmatpush1.msra.mxu0 0.0
        %1186 = vmatprep.mubr.f32.mxu0 0.0
        %1187 = vmatmul.mubr.f32.gmra.mrb[0].mxu0 %v567
        %v1188 = vpop.f32.mrb[0].mxu0
        %v1189 = vadd.f32 0.0, %v1188
        %v1190 = vpop.f32.mrb[0].mxu0
        %1191 = vdwg.mxu0
        %s1192 = scalar_lea.vmem [#allocation4], 512
        %v1193 = vld [vmem:[%s1192] sm:$0xff]
        %v1194 = vld [vmem:[%s1192 + $0x8] sm:$0xff]
        %v1195 = vld [vmem:[%s1192 + $0x10] sm:$0xff]
        %v1196 = vld [vmem:[%s1192 + $0x18] sm:$0xff]
        %v1197 = vld [vmem:[%s1192 + $0x20] sm:$0xff]
        %v1198 = vld [vmem:[%s1192 + $0x28] sm:$0xff]
        %v1199 = vld [vmem:[%s1192 + $0x30] sm:$0xff]
        %v1200 = vld [vmem:[%s1192 + $0x38] sm:$0xff]
        %1201 = vmatprep.subr.mxu0 0.0
        %1202 = vmatpush1.msra.mxu0 %v1193
        %1203 = vmatprep.subr.mxu0 0.0
        %1204 = vmatpush1.msra.mxu0 %v1194
        %1205 = vmatprep.subr.mxu0 0.0
        %1206 = vmatpush1.msra.mxu0 %v1195
        %1207 = vmatprep.subr.mxu0 0.0
        %1208 = vmatpush1.msra.mxu0 %v1196
        %1209 = vmatprep.subr.mxu0 0.0
        %1210 = vmatpush1.msra.mxu0 %v1197
        %1211 = vmatprep.subr.mxu0 0.0
        %1212 = vmatpush1.msra.mxu0 %v1198
        %1213 = vmatprep.subr.mxu0 0.0
        %1214 = vmatpush1.msra.mxu0 %v1199
        %1215 = vmatprep.subr.mxu0 0.0
        %1216 = vmatpush1.msra.mxu0 %v1200
        %1217 = vmatprep.subr.mxu0 0.0
        %1218 = vmatpush1.msra.mxu0 0.0
        %1219 = vmatprep.subr.mxu0 0.0
        %1220 = vmatpush1.msra.mxu0 0.0
        %1221 = vmatprep.subr.mxu0 0.0
        %1222 = vmatpush1.msra.mxu0 0.0
        %1223 = vmatprep.subr.mxu0 0.0
        %1224 = vmatpush1.msra.mxu0 0.0
        %1225 = vmatprep.subr.mxu0 0.0
        %1226 = vmatpush1.msra.mxu0 0.0
        %1227 = vmatprep.subr.mxu0 0.0
        %1228 = vmatpush1.msra.mxu0 0.0
        %1229 = vmatprep.subr.mxu0 0.0
        %1230 = vmatpush1.msra.mxu0 0.0
        %1231 = vmatprep.subr.mxu0 0.0
        %1232 = vmatpush1.msra.mxu0 0.0
        %1233 = vmatprep.subr.mxu0 0.0
        %1234 = vmatpush1.msra.mxu0 0.0
        %1235 = vmatprep.subr.mxu0 0.0
        %1236 = vmatpush1.msra.mxu0 0.0
        %1237 = vmatprep.subr.mxu0 0.0
        %1238 = vmatpush1.msra.mxu0 0.0
        %1239 = vmatprep.subr.mxu0 0.0
        %1240 = vmatpush1.msra.mxu0 0.0
        %1241 = vmatprep.subr.mxu0 0.0
        %1242 = vmatpush1.msra.mxu0 0.0
        %1243 = vmatprep.subr.mxu0 0.0
        %1244 = vmatpush1.msra.mxu0 0.0
        %1245 = vmatprep.subr.mxu0 0.0
        %1246 = vmatpush1.msra.mxu0 0.0
        %1247 = vmatprep.subr.mxu0 0.0
        %1248 = vmatpush1.msra.mxu0 0.0
        %1249 = vmatprep.subr.mxu0 0.0
        %1250 = vmatpush1.msra.mxu0 0.0
        %1251 = vmatprep.subr.mxu0 0.0
        %1252 = vmatpush1.msra.mxu0 0.0
        %1253 = vmatprep.subr.mxu0 0.0
        %1254 = vmatpush1.msra.mxu0 0.0
        %1255 = vmatprep.subr.mxu0 0.0
        %1256 = vmatpush1.msra.mxu0 0.0
        %1257 = vmatprep.subr.mxu0 0.0
        %1258 = vmatpush1.msra.mxu0 0.0
        %1259 = vmatprep.subr.mxu0 0.0
        %1260 = vmatpush1.msra.mxu0 0.0
        %1261 = vmatprep.subr.mxu0 0.0
        %1262 = vmatpush1.msra.mxu0 0.0
        %1263 = vmatprep.subr.mxu0 0.0
        %1264 = vmatpush1.msra.mxu0 0.0
        %1265 = vmatprep.mubr.f32.mxu0 0.0
        %1266 = vmatmul.mubr.f32.gmra.mrb[0].mxu0 %v567
        %v1267 = vpop.f32.mrb[0].mxu0
        %v1268 = vadd.f32 0.0, %v1267
        %v1269 = vpop.f32.mrb[0].mxu0
        %1270 = vdwg.mxu0
        %s1271 = scalar_lea.vmem %s3, 8
        %v1272 = vld [vmem:[%s1271] sm:$0xff]
        %1273 = vset.pattern.permute.xlu0 4
        %1274 = vperm.xlu0 %1273, %v427
        %v1275 = vpop.permute.xlu0 %1274
        %vm1277 = vcmask 588800
        %v1279 = vsel %vm1277, %v1272, 0
        %1281 = vmatprep.subr.mxu0 0.0
        %1282 = vmatpush1.msra.mxu0 %v636
        %1283 = vmatprep.subr.mxu0 0.0
        %1284 = vmatpush1.msra.mxu0 %v715
        %1285 = vmatprep.subr.mxu0 0.0
        %1286 = vmatpush1.msra.mxu0 %v794
        %1287 = vmatprep.subr.mxu0 0.0
        %1288 = vmatpush1.msra.mxu0 %v873
        %1289 = vmatprep.subr.mxu0 0.0
        %1290 = vmatpush1.msra.mxu0 %v952
        %1291 = vmatprep.subr.mxu0 0.0
        %1292 = vmatpush1.msra.mxu0 %v1031
        %1293 = vmatprep.subr.mxu0 0.0
        %1294 = vmatpush1.msra.mxu0 %v1110
        %1295 = vmatprep.subr.mxu0 0.0
        %1296 = vmatpush1.msra.mxu0 %v1189
        %1297 = vmatprep.subr.mxu0 0.0
        %1298 = vmatpush1.msra.mxu0 %v1268
        %1299 = vmatprep.subr.mxu0 0.0
        %1300 = vmatpush1.msra.mxu0 0.0
        %1301 = vmatprep.subr.mxu0 0.0
        %1302 = vmatpush1.msra.mxu0 0.0
        %1303 = vmatprep.subr.mxu0 0.0
        %1304 = vmatpush1.msra.mxu0 0.0
        %1305 = vmatprep.subr.mxu0 0.0
        %1306 = vmatpush1.msra.mxu0 0.0
        %1307 = vmatprep.subr.mxu0 0.0
        %1308 = vmatpush1.msra.mxu0 0.0
        %1309 = vmatprep.subr.mxu0 0.0
        %1310 = vmatpush1.msra.mxu0 0.0
        %1311 = vmatprep.subr.mxu0 0.0
        %1312 = vmatpush1.msra.mxu0 0.0
        %1313 = vmatprep.subr.mxu0 0.0
        %1314 = vmatpush1.msra.mxu0 0.0
        %1315 = vmatprep.subr.mxu0 0.0
        %1316 = vmatpush1.msra.mxu0 0.0
        %1317 = vmatprep.subr.mxu0 0.0
        %1318 = vmatpush1.msra.mxu0 0.0
        %1319 = vmatprep.subr.mxu0 0.0
        %1320 = vmatpush1.msra.mxu0 0.0
        %1321 = vmatprep.subr.mxu0 0.0
        %1322 = vmatpush1.msra.mxu0 0.0
        %1323 = vmatprep.subr.mxu0 0.0
        %1324 = vmatpush1.msra.mxu0 0.0
        %1325 = vmatprep.subr.mxu0 0.0
        %1326 = vmatpush1.msra.mxu0 0.0
        %1327 = vmatprep.subr.mxu0 0.0
        %1328 = vmatpush1.msra.mxu0 0.0
        %1329 = vmatprep.subr.mxu0 0.0
        %1330 = vmatpush1.msra.mxu0 0.0
        %1331 = vmatprep.subr.mxu0 0.0
        %1332 = vmatpush1.msra.mxu0 0.0
        %1333 = vmatprep.subr.mxu0 0.0
        %1334 = vmatpush1.msra.mxu0 0.0
        %1335 = vmatprep.subr.mxu0 0.0
        %1336 = vmatpush1.msra.mxu0 0.0
        %1337 = vmatprep.subr.mxu0 0.0
        %1338 = vmatpush1.msra.mxu0 0.0
        %1339 = vmatprep.subr.mxu0 0.0
        %1340 = vmatpush1.msra.mxu0 0.0
        %1341 = vmatprep.subr.mxu0 0.0
        %1342 = vmatpush1.msra.mxu0 0.0
        %1343 = vmatprep.subr.mxu0 0.0
        %1344 = vmatpush1.msra.mxu0 0.0
        %1345 = vmatprep.mubr.f32.mxu0 0.0
        %1346 = vmatmul.mubr.f32.gmra.mrb[0].mxu0 %v1279
        %v1347 = vpop.f32.mrb[0].mxu0
        %v1348 = vadd.f32 %v1275, %v1347
        %v1349 = vpop.f32.mrb[0].mxu0
        %1350 = vdwg.mxu0
        %v1351 = vld [vmem:[%s7] sm:$0xff]
        %v1352 = vld [vmem:[%s7 + $0x8] sm:$0xff]
        %v1353 = vld [vmem:[%s7 + $0x10] sm:$0xff]
        %v1354 = vld [vmem:[%s7 + $0x18] sm:$0xff]
        %v1355 = vld [vmem:[%s7 + $0x20] sm:$0xff]
        %v1356 = vld [vmem:[%s7 + $0x28] sm:$0xff]
        %v1357 = vld [vmem:[%s7 + $0x30] sm:$0xff]
        %v1358 = vld [vmem:[%s7 + $0x38] sm:$0xff]
        %v1359 = vld [vmem:[%s7 + $0x40] sm:$0xff]
        %v1360 = vld [vmem:[%s7 + $0x48] sm:$0xff]
        %v1361 = vld [vmem:[%s7 + $0x50] sm:$0xff]
        %v1362 = vld [vmem:[%s7 + $0x58] sm:$0xff]
        %v1363 = vld [vmem:[%s7 + $0x60] sm:$0xff]
        %v1364 = vld [vmem:[%s7 + $0x68] sm:$0xff]
        %v1365 = vld [vmem:[%s7 + $0x70] sm:$0xff]
        %v1366 = vld [vmem:[%s7 + $0x78] sm:$0xff]
        %v1368 = vsel %vm565, %v1348, 0
        %1370 = vmatprep.subr.mxu0 %v1352
        %1371 = vmatpush1.msra.mxu0 %v1351
        %1372 = vmatprep.subr.mxu0 %v1354
        %1373 = vmatpush1.msra.mxu0 %v1353
        %1374 = vmatprep.subr.mxu0 %v1356
        %1375 = vmatpush1.msra.mxu0 %v1355
        %1376 = vmatprep.subr.mxu0 %v1358
        %1377 = vmatpush1.msra.mxu0 %v1357
        %1378 = vmatprep.subr.mxu0 %v1360
        %1379 = vmatpush1.msra.mxu0 %v1359
        %1380 = vmatprep.subr.mxu0 %v1362
        %1381 = vmatpush1.msra.mxu0 %v1361
        %1382 = vmatprep.subr.mxu0 %v1364
        %1383 = vmatpush1.msra.mxu0 %v1363
        %1384 = vmatprep.subr.mxu0 %v1366
        %1385 = vmatpush1.msra.mxu0 %v1365
        %1386 = vmatprep.subr.mxu0 0.0
        %1387 = vmatpush1.msra.mxu0 0.0
        %1388 = vmatprep.subr.mxu0 0.0
        %1389 = vmatpush1.msra.mxu0 0.0
        %1390 = vmatprep.subr.mxu0 0.0
        %1391 = vmatpush1.msra.mxu0 0.0
        %1392 = vmatprep.subr.mxu0 0.0
        %1393 = vmatpush1.msra.mxu0 0.0
        %1394 = vmatprep.subr.mxu0 0.0
        %1395 = vmatpush1.msra.mxu0 0.0
        %1396 = vmatprep.subr.mxu0 0.0
        %1397 = vmatpush1.msra.mxu0 0.0
        %1398 = vmatprep.subr.mxu0 0.0
        %1399 = vmatpush1.msra.mxu0 0.0
        %1400 = vmatprep.subr.mxu0 0.0
        %1401 = vmatpush1.msra.mxu0 0.0
        %1402 = vmatprep.subr.mxu0 0.0
        %1403 = vmatpush1.msra.mxu0 0.0
        %1404 = vmatprep.subr.mxu0 0.0
        %1405 = vmatpush1.msra.mxu0 0.0
        %1406 = vmatprep.subr.mxu0 0.0
        %1407 = vmatpush1.msra.mxu0 0.0
        %1408 = vmatprep.subr.mxu0 0.0
        %1409 = vmatpush1.msra.mxu0 0.0
        %1410 = vmatprep.subr.mxu0 0.0
        %1411 = vmatpush1.msra.mxu0 0.0
        %1412 = vmatprep.subr.mxu0 0.0
        %1413 = vmatpush1.msra.mxu0 0.0
        %1414 = vmatprep.subr.mxu0 0.0
        %1415 = vmatpush1.msra.mxu0 0.0
        %1416 = vmatprep.subr.mxu0 0.0
        %1417 = vmatpush1.msra.mxu0 0.0
        %1418 = vmatprep.subr.mxu0 0.0
        %1419 = vmatpush1.msra.mxu0 0.0
        %1420 = vmatprep.subr.mxu0 0.0
        %1421 = vmatpush1.msra.mxu0 0.0
        %1422 = vmatprep.subr.mxu0 0.0
        %1423 = vmatpush1.msra.mxu0 0.0
        %1424 = vmatprep.subr.mxu0 0.0
        %1425 = vmatpush1.msra.mxu0 0.0
        %1426 = vmatprep.subr.mxu0 0.0
        %1427 = vmatpush1.msra.mxu0 0.0
        %1428 = vmatprep.subr.mxu0 0.0
        %1429 = vmatpush1.msra.mxu0 0.0
        %1430 = vmatprep.subr.mxu0 0.0
        %1431 = vmatpush1.msra.mxu0 0.0
        %1432 = vmatprep.subr.mxu0 0.0
        %1433 = vmatpush1.msra.mxu0 0.0
        %1434 = vmatprep.mubr.f32.mxu0 0.0
        %1435 = vmatmul.mubr.f32.gmra.mrb[0].mxu0 %v1368
        %v1436 = vpop.f32.mrb[0].mxu0
        %v1437 = vadd.f32 0.0, %v1436
        %v1438 = vpop.f32.mrb[0].mxu0
        %v1439 = vadd.f32 0.0, %v1438
        %1440 = vdwg.mxu0
        %v1441 = vadd.f32 %v417, %v1437
        %v1442 = vadd.f32 %v419, %v1439
        %v1443 = vsub.f32 0.0, %v1441
        %v1444 = vsub.f32 0.0, %v1442
        %v1445 = vmul.f32 %v1443, 1.442695
        %v1446 = vpow.pop %v1445
        %v1447 = vmul.f32 %v1444, 1.442695
        %v1448 = vpow.pop %v1447
        %v1449 = vadd.f32 %v1446, 1.0
        %v1450 = vadd.f32 %v1448, 1.0
        %v1451 = vrcp.pop %v1449
        %v1452 = vrcp.pop %v1450
        %s1453 = scalar_lea.vmem %s3, 16
        %v1454 = vld [vmem:[%s1453] sm:$0xff]
        %1455 = vrot.lane.b32.xlu0 %v441, 17
        %v1456 = vpop.permute.xlu0 %1455
        %1457 = vrot.lane.b32.xlu0 %v442, 17
        %v1458 = vpop.permute.xlu0 %1457
        %v1459 = vlaneseq
        %v1460 = vand.u32 %v1459, 127
        %vm1461 = vcmp.lt.s32.totalorder %v1460, 17
        %v1462 = vsel %vm1461, %v1456, %v1458
        %v1463 = vsel %vm1461, %v1458, %v1456
        %v1464 = vlaneseq
        %v1465 = vshrl.u32 %v1464, 7
        %v1466 = vsub.s32 0, %v1465
        %v1467 = vrot.slane %v451, %v1466
        %v1468 = vlaneseq
        %v1469 = vshrl.u32 %v1468, 7
        %v1470 = vsub.s32 0, %v1469
        %v1471 = vrot.slane %v452, %v1470
        %v1472 = vmul.f32 %v1463, %v1467
        %v1473 = vmul.f32 %v1462, %v1471
        %1474 = vrot.lane.b32.xlu0 %v441, 16
        %v1475 = vpop.permute.xlu0 %1474
        %1476 = vrot.lane.b32.xlu0 %v442, 16
        %v1477 = vpop.permute.xlu0 %1476
        %vm1478 = vcmp.lt.s32.totalorder %v1460, 16
        %v1479 = vsel %vm1478, %v1475, %v1477
        %v1480 = vsel %vm1478, %v1477, %v1475
        %v1481 = vlaneseq
        %v1482 = vshrl.u32 %v1481, 7
        %v1483 = vsub.s32 1, %v1482
        %v1484 = vrot.slane %v451, %v1483
        %v1485 = vlaneseq
        %v1486 = vshrl.u32 %v1485, 7
        %v1487 = vsub.s32 1, %v1486
        %v1488 = vrot.slane %v452, %v1487
        %v1489 = vmul.f32 %v1480, %v1484
        %v1490 = vmul.f32 %v1479, %v1488
        %1491 = vrot.lane.b32.xlu0 %v441, 15
        %v1492 = vpop.permute.xlu0 %1491
        %1493 = vrot.lane.b32.xlu0 %v442, 15
        %v1494 = vpop.permute.xlu0 %1493
        %vm1495 = vcmp.lt.s32.totalorder %v1460, 15
        %v1496 = vsel %vm1495, %v1492, %v1494
        %v1497 = vsel %vm1495, %v1494, %v1492
        %v1498 = vlaneseq
        %v1499 = vshrl.u32 %v1498, 7
        %v1500 = vsub.s32 2, %v1499
        %v1501 = vrot.slane %v451, %v1500
        %v1502 = vlaneseq
        %v1503 = vshrl.u32 %v1502, 7
        %v1504 = vsub.s32 2, %v1503
        %v1505 = vrot.slane %v452, %v1504
        %v1506 = vmul.f32 %v1497, %v1501
        %v1507 = vmul.f32 %v1496, %v1505
        %1508 = vrot.lane.b32.xlu0 %v441, 1
        %v1509 = vpop.permute.xlu0 %1508
        %1510 = vrot.lane.b32.xlu0 %v442, 1
        %v1511 = vpop.permute.xlu0 %1510
        %vm1512 = vcmp.lt.s32.totalorder %v1460, 1
        %v1513 = vsel %vm1512, %v1509, %v1511
        %v1514 = vsel %vm1512, %v1511, %v1509
        %v1515 = vlaneseq
        %v1516 = vshrl.u32 %v1515, 7
        %v1517 = vsub.s32 3, %v1516
        %v1518 = vrot.slane %v451, %v1517
        %v1519 = vlaneseq
        %v1520 = vshrl.u32 %v1519, 7
        %v1521 = vsub.s32 3, %v1520
        %v1522 = vrot.slane %v452, %v1521
        %v1523 = vmul.f32 %v1514, %v1518
        %v1524 = vmul.f32 %v1513, %v1522
        %1525 = vrot.lane.b32.xlu0 %v441, 127
        %v1526 = vpop.permute.xlu0 %1525
        %1527 = vrot.lane.b32.xlu0 %v442, 127
        %v1528 = vpop.permute.xlu0 %1527
        %vm1529 = vcmp.lt.s32.totalorder %v1460, 127
        %v1530 = vsel %vm1529, %v1526, %v1528
        %v1531 = vsel %vm1529, %v1528, %v1526
        %v1532 = vlaneseq
        %v1533 = vshrl.u32 %v1532, 7
        %v1534 = vsub.s32 5, %v1533
        %v1535 = vrot.slane %v451, %v1534
        %v1536 = vlaneseq
        %v1537 = vshrl.u32 %v1536, 7
        %v1538 = vsub.s32 5, %v1537
        %v1539 = vrot.slane %v452, %v1538
        %v1540 = vmul.f32 %v1530, %v1535
        %v1541 = vmul.f32 %v1531, %v1539
        %1542 = vrot.lane.b32.xlu0 %v441, 113
        %v1543 = vpop.permute.xlu0 %1542
        %1544 = vrot.lane.b32.xlu0 %v442, 113
        %v1545 = vpop.permute.xlu0 %1544
        %vm1546 = vcmp.lt.s32.totalorder %v1460, 113
        %v1547 = vsel %vm1546, %v1543, %v1545
        %v1548 = vsel %vm1546, %v1545, %v1543
        %v1549 = vlaneseq
        %v1550 = vshrl.u32 %v1549, 7
        %v1551 = vsub.s32 6, %v1550
        %v1552 = vrot.slane %v451, %v1551
        %v1553 = vlaneseq
        %v1554 = vshrl.u32 %v1553, 7
        %v1555 = vsub.s32 6, %v1554
        %v1556 = vrot.slane %v452, %v1555
        %v1557 = vmul.f32 %v1547, %v1552
        %v1558 = vmul.f32 %v1548, %v1556
        %1559 = vrot.lane.b32.xlu0 %v441, 112
        %v1560 = vpop.permute.xlu0 %1559
        %1561 = vrot.lane.b32.xlu0 %v442, 112
        %v1562 = vpop.permute.xlu0 %1561
        %vm1563 = vcmp.lt.s32.totalorder %v1460, 112
        %v1564 = vsel %vm1563, %v1560, %v1562
        %v1565 = vsel %vm1563, %v1562, %v1560
        %v1566 = vlaneseq
        %v1567 = vshrl.u32 %v1566, 7
        %v1568 = vsub.s32 7, %v1567
        %v1569 = vrot.slane %v451, %v1568
        %v1570 = vlaneseq
        %v1571 = vshrl.u32 %v1570, 7
        %v1572 = vsub.s32 7, %v1571
        %v1573 = vrot.slane %v452, %v1572
        %v1574 = vmul.f32 %v1564, %v1569
        %v1575 = vmul.f32 %v1565, %v1573
        %1576 = vrot.lane.b32.xlu0 %v441, 111
        %v1577 = vpop.permute.xlu0 %1576
        %1578 = vrot.lane.b32.xlu0 %v442, 111
        %v1579 = vpop.permute.xlu0 %1578
        %vm1580 = vcmp.lt.s32.totalorder %v1460, 111
        %v1581 = vsel %vm1580, %v1577, %v1579
        %v1582 = vsel %vm1580, %v1579, %v1577
        %v1583 = vlaneseq
        %v1584 = vshrl.u32 %v1583, 7
        %v1585 = vsub.s32 0, %v1584
        %v1586 = vrot.slane %v453, %v1585
        %v1587 = vlaneseq
        %v1588 = vshrl.u32 %v1587, 7
        %v1589 = vsub.s32 0, %v1588
        %v1590 = vrot.slane %v454, %v1589
        %v1591 = vmul.f32 %v1581, %v1586
        %v1592 = vmul.f32 %v1582, %v1590
        %1593 = vset.pattern.permute.xlu0 5
        %1594 = vperm.xlu0 %1593, %v427
        %v1595 = vpop.permute.xlu0 %1594
        %v1598 = vsel %vm1277, %v1454, 0
        %1600 = vmatprep.subr.mxu0 %v1473
        %1601 = vmatpush1.msra.mxu0 %v1472
        %1602 = vmatprep.subr.mxu0 %v1490
        %1603 = vmatpush1.msra.mxu0 %v1489
        %1604 = vmatprep.subr.mxu0 %v1507
        %1605 = vmatpush1.msra.mxu0 %v1506
        %1606 = vmatprep.subr.mxu0 %v1524
        %1607 = vmatpush1.msra.mxu0 %v1523
        %1608 = vmatprep.subr.mxu0 %v442
        %1609 = vmatpush1.msra.mxu0 %v441
        %1610 = vmatprep.subr.mxu0 %v1541
        %1611 = vmatpush1.msra.mxu0 %v1540
        %1612 = vmatprep.subr.mxu0 %v1558
        %1613 = vmatpush1.msra.mxu0 %v1557
        %1614 = vmatprep.subr.mxu0 %v1575
        %1615 = vmatpush1.msra.mxu0 %v1574
        %1616 = vmatprep.subr.mxu0 %v1592
        %1617 = vmatpush1.msra.mxu0 %v1591
        %1618 = vmatprep.subr.mxu0 0.0
        %1619 = vmatpush1.msra.mxu0 0.0
        %1620 = vmatprep.subr.mxu0 0.0
        %1621 = vmatpush1.msra.mxu0 0.0
        %1622 = vmatprep.subr.mxu0 0.0
        %1623 = vmatpush1.msra.mxu0 0.0
        %1624 = vmatprep.subr.mxu0 0.0
        %1625 = vmatpush1.msra.mxu0 0.0
        %1626 = vmatprep.subr.mxu0 0.0
        %1627 = vmatpush1.msra.mxu0 0.0
        %1628 = vmatprep.subr.mxu0 0.0
        %1629 = vmatpush1.msra.mxu0 0.0
        %1630 = vmatprep.subr.mxu0 0.0
        %1631 = vmatpush1.msra.mxu0 0.0
        %1632 = vmatprep.subr.mxu0 0.0
        %1633 = vmatpush1.msra.mxu0 0.0
        %1634 = vmatprep.subr.mxu0 0.0
        %1635 = vmatpush1.msra.mxu0 0.0
        %1636 = vmatprep.subr.mxu0 0.0
        %1637 = vmatpush1.msra.mxu0 0.0
        %1638 = vmatprep.subr.mxu0 0.0
        %1639 = vmatpush1.msra.mxu0 0.0
        %1640 = vmatprep.subr.mxu0 0.0
        %1641 = vmatpush1.msra.mxu0 0.0
        %1642 = vmatprep.subr.mxu0 0.0
        %1643 = vmatpush1.msra.mxu0 0.0
        %1644 = vmatprep.subr.mxu0 0.0
        %1645 = vmatpush1.msra.mxu0 0.0
        %1646 = vmatprep.subr.mxu0 0.0
        %1647 = vmatpush1.msra.mxu0 0.0
        %1648 = vmatprep.subr.mxu0 0.0
        %1649 = vmatpush1.msra.mxu0 0.0
        %1650 = vmatprep.subr.mxu0 0.0
        %1651 = vmatpush1.msra.mxu0 0.0
        %1652 = vmatprep.subr.mxu0 0.0
        %1653 = vmatpush1.msra.mxu0 0.0
        %1654 = vmatprep.subr.mxu0 0.0
        %1655 = vmatpush1.msra.mxu0 0.0
        %1656 = vmatprep.subr.mxu0 0.0
        %1657 = vmatpush1.msra.mxu0 0.0
        %1658 = vmatprep.subr.mxu0 0.0
        %1659 = vmatpush1.msra.mxu0 0.0
        %1660 = vmatprep.subr.mxu0 0.0
        %1661 = vmatpush1.msra.mxu0 0.0
        %1662 = vmatprep.subr.mxu0 0.0
        %1663 = vmatpush1.msra.mxu0 0.0
        %1664 = vmatprep.mubr.f32.mxu0 0.0
        %1665 = vmatmul.mubr.f32.gmra.mrb[0].mxu0 %v1598
        %v1666 = vpop.f32.mrb[0].mxu0
        %v1667 = vadd.f32 %v1595, %v1666
        %v1668 = vpop.f32.mrb[0].mxu0
        %v1669 = vadd.f32 %v1595, %v1668
        %1670 = vdwg.mxu0
        %v1671 = vmul.f32 %v1667, %v1451
        %v1672 = vmul.f32 %v1669, %v1452
        %s1673 = scalar_lea.vmem %s3, 24
        %v1674 = vld [vmem:[%s1673] sm:$0xff]
        %1675 = vrot.lane.b32.xlu0 %v1671, 17
        %v1676 = vpop.permute.xlu0 %1675
        %1677 = vrot.lane.b32.xlu0 %v1672, 17
        %v1678 = vpop.permute.xlu0 %1677
        %v1679 = vsel %vm1461, %v1676, %v1678
        %v1680 = vsel %vm1461, %v1678, %v1676
        %v1681 = vmul.f32 %v1680, %v1467
        %v1682 = vmul.f32 %v1679, %v1471
        %1683 = vrot.lane.b32.xlu0 %v1671, 16
        %v1684 = vpop.permute.xlu0 %1683
        %1685 = vrot.lane.b32.xlu0 %v1672, 16
        %v1686 = vpop.permute.xlu0 %1685
        %v1687 = vsel %vm1478, %v1684, %v1686
        %v1688 = vsel %vm1478, %v1686, %v1684
        %v1689 = vmul.f32 %v1688, %v1484
        %v1690 = vmul.f32 %v1687, %v1488
        %1691 = vrot.lane.b32.xlu0 %v1671, 15
        %v1692 = vpop.permute.xlu0 %1691
        %1693 = vrot.lane.b32.xlu0 %v1672, 15
        %v1694 = vpop.permute.xlu0 %1693
        %v1695 = vsel %vm1495, %v1692, %v1694
        %v1696 = vsel %vm1495, %v1694, %v1692
        %v1697 = vmul.f32 %v1696, %v1501
        %v1698 = vmul.f32 %v1695, %v1505
        %1699 = vrot.lane.b32.xlu0 %v1671, 1
        %v1700 = vpop.permute.xlu0 %1699
        %1701 = vrot.lane.b32.xlu0 %v1672, 1
        %v1702 = vpop.permute.xlu0 %1701
        %v1703 = vsel %vm1512, %v1700, %v1702
        %v1704 = vsel %vm1512, %v1702, %v1700
        %v1705 = vmul.f32 %v1704, %v1518
        %v1706 = vmul.f32 %v1703, %v1522
        %1707 = vrot.lane.b32.xlu0 %v1671, 127
        %v1708 = vpop.permute.xlu0 %1707
        %1709 = vrot.lane.b32.xlu0 %v1672, 127
        %v1710 = vpop.permute.xlu0 %1709
        %v1711 = vsel %vm1529, %v1708, %v1710
        %v1712 = vsel %vm1529, %v1710, %v1708
        %v1713 = vmul.f32 %v1711, %v1535
        %v1714 = vmul.f32 %v1712, %v1539
        %1715 = vrot.lane.b32.xlu0 %v1671, 113
        %v1716 = vpop.permute.xlu0 %1715
        %1717 = vrot.lane.b32.xlu0 %v1672, 113
        %v1718 = vpop.permute.xlu0 %1717
        %v1719 = vsel %vm1546, %v1716, %v1718
        %v1720 = vsel %vm1546, %v1718, %v1716
        %v1721 = vmul.f32 %v1719, %v1552
        %v1722 = vmul.f32 %v1720, %v1556
        %1723 = vrot.lane.b32.xlu0 %v1671, 112
        %v1724 = vpop.permute.xlu0 %1723
        %1725 = vrot.lane.b32.xlu0 %v1672, 112
        %v1726 = vpop.permute.xlu0 %1725
        %v1727 = vsel %vm1563, %v1724, %v1726
        %v1728 = vsel %vm1563, %v1726, %v1724
        %v1729 = vmul.f32 %v1727, %v1569
        %v1730 = vmul.f32 %v1728, %v1573
        %1731 = vrot.lane.b32.xlu0 %v1671, 111
        %v1732 = vpop.permute.xlu0 %1731
        %1733 = vrot.lane.b32.xlu0 %v1672, 111
        %v1734 = vpop.permute.xlu0 %1733
        %v1735 = vsel %vm1580, %v1732, %v1734
        %v1736 = vsel %vm1580, %v1734, %v1732
        %v1737 = vmul.f32 %v1735, %v1586
        %v1738 = vmul.f32 %v1736, %v1590
        %1739 = vset.pattern.permute.xlu0 6
        %1740 = vperm.xlu0 %1739, %v427
        %v1741 = vpop.permute.xlu0 %1740
        %v1744 = vsel %vm1277, %v1674, 0
        %1746 = vmatprep.subr.mxu0 %v1682
        %1747 = vmatpush1.msra.mxu0 %v1681
        %1748 = vmatprep.subr.mxu0 %v1690
        %1749 = vmatpush1.msra.mxu0 %v1689
        %1750 = vmatprep.subr.mxu0 %v1698
        %1751 = vmatpush1.msra.mxu0 %v1697
        %1752 = vmatprep.subr.mxu0 %v1706
        %1753 = vmatpush1.msra.mxu0 %v1705
        %1754 = vmatprep.subr.mxu0 %v1672
        %1755 = vmatpush1.msra.mxu0 %v1671
        %1756 = vmatprep.subr.mxu0 %v1714
        %1757 = vmatpush1.msra.mxu0 %v1713
        %1758 = vmatprep.subr.mxu0 %v1722
        %1759 = vmatpush1.msra.mxu0 %v1721
        %1760 = vmatprep.subr.mxu0 %v1730
        %1761 = vmatpush1.msra.mxu0 %v1729
        %1762 = vmatprep.subr.mxu0 %v1738
        %1763 = vmatpush1.msra.mxu0 %v1737
        %1764 = vmatprep.subr.mxu0 0.0
        %1765 = vmatpush1.msra.mxu0 0.0
        %1766 = vmatprep.subr.mxu0 0.0
        %1767 = vmatpush1.msra.mxu0 0.0
        %1768 = vmatprep.subr.mxu0 0.0
        %1769 = vmatpush1.msra.mxu0 0.0
        %1770 = vmatprep.subr.mxu0 0.0
        %1771 = vmatpush1.msra.mxu0 0.0
        %1772 = vmatprep.subr.mxu0 0.0
        %1773 = vmatpush1.msra.mxu0 0.0
        %1774 = vmatprep.subr.mxu0 0.0
        %1775 = vmatpush1.msra.mxu0 0.0
        %1776 = vmatprep.subr.mxu0 0.0
        %1777 = vmatpush1.msra.mxu0 0.0
        %1778 = vmatprep.subr.mxu0 0.0
        %1779 = vmatpush1.msra.mxu0 0.0
        %1780 = vmatprep.subr.mxu0 0.0
        %1781 = vmatpush1.msra.mxu0 0.0
        %1782 = vmatprep.subr.mxu0 0.0
        %1783 = vmatpush1.msra.mxu0 0.0
        %1784 = vmatprep.subr.mxu0 0.0
        %1785 = vmatpush1.msra.mxu0 0.0
        %1786 = vmatprep.subr.mxu0 0.0
        %1787 = vmatpush1.msra.mxu0 0.0
        %1788 = vmatprep.subr.mxu0 0.0
        %1789 = vmatpush1.msra.mxu0 0.0
        %1790 = vmatprep.subr.mxu0 0.0
        %1791 = vmatpush1.msra.mxu0 0.0
        %1792 = vmatprep.subr.mxu0 0.0
        %1793 = vmatpush1.msra.mxu0 0.0
        %1794 = vmatprep.subr.mxu0 0.0
        %1795 = vmatpush1.msra.mxu0 0.0
        %1796 = vmatprep.subr.mxu0 0.0
        %1797 = vmatpush1.msra.mxu0 0.0
        %1798 = vmatprep.subr.mxu0 0.0
        %1799 = vmatpush1.msra.mxu0 0.0
        %1800 = vmatprep.subr.mxu0 0.0
        %1801 = vmatpush1.msra.mxu0 0.0
        %1802 = vmatprep.subr.mxu0 0.0
        %1803 = vmatpush1.msra.mxu0 0.0
        %1804 = vmatprep.subr.mxu0 0.0
        %1805 = vmatpush1.msra.mxu0 0.0
        %1806 = vmatprep.subr.mxu0 0.0
        %1807 = vmatpush1.msra.mxu0 0.0
        %1808 = vmatprep.subr.mxu0 0.0
        %1809 = vmatpush1.msra.mxu0 0.0
        %1810 = vmatprep.mubr.f32.mxu0 0.0
        %1811 = vmatmul.mubr.f32.gmra.mrb[0].mxu0 %v1744
        %v1812 = vpop.f32.mrb[0].mxu0
        %v1813 = vadd.f32 %v1741, %v1812
        %v1814 = vpop.f32.mrb[0].mxu0
        %v1815 = vadd.f32 %v1741, %v1814
        %1816 = vdwg.mxu0
        %v1817 = vld [vmem:[%s3] sm:$0xff]
        %1818 = vrot.lane.b32.xlu0 %v449, 17
        %v1819 = vpop.permute.xlu0 %1818
        %1820 = vrot.lane.b32.xlu0 %v450, 17
        %v1821 = vpop.permute.xlu0 %1820
        %v1822 = vsel %vm1461, %v1819, %v1821
        %v1823 = vsel %vm1461, %v1821, %v1819
        %v1824 = vmul.f32 %v1823, %v1467
        %v1825 = vmul.f32 %v1822, %v1471
        %1826 = vrot.lane.b32.xlu0 %v449, 16
        %v1827 = vpop.permute.xlu0 %1826
        %1828 = vrot.lane.b32.xlu0 %v450, 16
        %v1829 = vpop.permute.xlu0 %1828
        %v1830 = vsel %vm1478, %v1827, %v1829
        %v1831 = vsel %vm1478, %v1829, %v1827
        %v1832 = vmul.f32 %v1831, %v1484
        %v1833 = vmul.f32 %v1830, %v1488
        %1834 = vrot.lane.b32.xlu0 %v449, 15
        %v1835 = vpop.permute.xlu0 %1834
        %1836 = vrot.lane.b32.xlu0 %v450, 15
        %v1837 = vpop.permute.xlu0 %1836
        %v1838 = vsel %vm1495, %v1835, %v1837
        %v1839 = vsel %vm1495, %v1837, %v1835
        %v1840 = vmul.f32 %v1839, %v1501
        %v1841 = vmul.f32 %v1838, %v1505
        %1842 = vrot.lane.b32.xlu0 %v449, 1
        %v1843 = vpop.permute.xlu0 %1842
        %1844 = vrot.lane.b32.xlu0 %v450, 1
        %v1845 = vpop.permute.xlu0 %1844
        %v1846 = vsel %vm1512, %v1843, %v1845
        %v1847 = vsel %vm1512, %v1845, %v1843
        %v1848 = vmul.f32 %v1847, %v1518
        %v1849 = vmul.f32 %v1846, %v1522
        %1850 = vrot.lane.b32.xlu0 %v449, 127
        %v1851 = vpop.permute.xlu0 %1850
        %1852 = vrot.lane.b32.xlu0 %v450, 127
        %v1853 = vpop.permute.xlu0 %1852
        %v1854 = vsel %vm1529, %v1851, %v1853
        %v1855 = vsel %vm1529, %v1853, %v1851
        %v1856 = vmul.f32 %v1854, %v1535
        %v1857 = vmul.f32 %v1855, %v1539
        %1858 = vrot.lane.b32.xlu0 %v449, 113
        %v1859 = vpop.permute.xlu0 %1858
        %1860 = vrot.lane.b32.xlu0 %v450, 113
        %v1861 = vpop.permute.xlu0 %1860
        %v1862 = vsel %vm1546, %v1859, %v1861
        %v1863 = vsel %vm1546, %v1861, %v1859
        %v1864 = vmul.f32 %v1862, %v1552
        %v1865 = vmul.f32 %v1863, %v1556
        %1866 = vrot.lane.b32.xlu0 %v449, 112
        %v1867 = vpop.permute.xlu0 %1866
        %1868 = vrot.lane.b32.xlu0 %v450, 112
        %v1869 = vpop.permute.xlu0 %1868
        %v1870 = vsel %vm1563, %v1867, %v1869
        %v1871 = vsel %vm1563, %v1869, %v1867
        %v1872 = vmul.f32 %v1870, %v1569
        %v1873 = vmul.f32 %v1871, %v1573
        %1874 = vrot.lane.b32.xlu0 %v449, 111
        %v1875 = vpop.permute.xlu0 %1874
        %1876 = vrot.lane.b32.xlu0 %v450, 111
        %v1877 = vpop.permute.xlu0 %1876
        %v1878 = vsel %vm1580, %v1875, %v1877
        %v1879 = vsel %vm1580, %v1877, %v1875
        %v1880 = vmul.f32 %v1878, %v1586
        %v1881 = vmul.f32 %v1879, %v1590
        %1882 = vset.pattern.permute.xlu0 3
        %1883 = vperm.xlu0 %1882, %v427
        %v1884 = vpop.permute.xlu0 %1883
        %v1887 = vsel %vm1277, %v1817, 0
        %1889 = vmatprep.subr.mxu0 %v1825
        %1890 = vmatpush1.msra.mxu0 %v1824
        %1891 = vmatprep.subr.mxu0 %v1833
        %1892 = vmatpush1.msra.mxu0 %v1832
        %1893 = vmatprep.subr.mxu0 %v1841
        %1894 = vmatpush1.msra.mxu0 %v1840
        %1895 = vmatprep.subr.mxu0 %v1849
        %1896 = vmatpush1.msra.mxu0 %v1848
        %1897 = vmatprep.subr.mxu0 %v450
        %1898 = vmatpush1.msra.mxu0 %v449
        %1899 = vmatprep.subr.mxu0 %v1857
        %1900 = vmatpush1.msra.mxu0 %v1856
        %1901 = vmatprep.subr.mxu0 %v1865
        %1902 = vmatpush1.msra.mxu0 %v1864
        %1903 = vmatprep.subr.mxu0 %v1873
        %1904 = vmatpush1.msra.mxu0 %v1872
        %1905 = vmatprep.subr.mxu0 %v1881
        %1906 = vmatpush1.msra.mxu0 %v1880
        %1907 = vmatprep.subr.mxu0 0.0
        %1908 = vmatpush1.msra.mxu0 0.0
        %1909 = vmatprep.subr.mxu0 0.0
        %1910 = vmatpush1.msra.mxu0 0.0
        %1911 = vmatprep.subr.mxu0 0.0
        %1912 = vmatpush1.msra.mxu0 0.0
        %1913 = vmatprep.subr.mxu0 0.0
        %1914 = vmatpush1.msra.mxu0 0.0
        %1915 = vmatprep.subr.mxu0 0.0
        %1916 = vmatpush1.msra.mxu0 0.0
        %1917 = vmatprep.subr.mxu0 0.0
        %1918 = vmatpush1.msra.mxu0 0.0
        %1919 = vmatprep.subr.mxu0 0.0
        %1920 = vmatpush1.msra.mxu0 0.0
        %1921 = vmatprep.subr.mxu0 0.0
        %1922 = vmatpush1.msra.mxu0 0.0
        %1923 = vmatprep.subr.mxu0 0.0
        %1924 = vmatpush1.msra.mxu0 0.0
        %1925 = vmatprep.subr.mxu0 0.0
        %1926 = vmatpush1.msra.mxu0 0.0
        %1927 = vmatprep.subr.mxu0 0.0
        %1928 = vmatpush1.msra.mxu0 0.0
        %1929 = vmatprep.subr.mxu0 0.0
        %1930 = vmatpush1.msra.mxu0 0.0
        %1931 = vmatprep.subr.mxu0 0.0
        %1932 = vmatpush1.msra.mxu0 0.0
        %1933 = vmatprep.subr.mxu0 0.0
        %1934 = vmatpush1.msra.mxu0 0.0
        %1935 = vmatprep.subr.mxu0 0.0
        %1936 = vmatpush1.msra.mxu0 0.0
        %1937 = vmatprep.subr.mxu0 0.0
        %1938 = vmatpush1.msra.mxu0 0.0
        %1939 = vmatprep.subr.mxu0 0.0
        %1940 = vmatpush1.msra.mxu0 0.0
        %1941 = vmatprep.subr.mxu0 0.0
        %1942 = vmatpush1.msra.mxu0 0.0
        %1943 = vmatprep.subr.mxu0 0.0
        %1944 = vmatpush1.msra.mxu0 0.0
        %1945 = vmatprep.subr.mxu0 0.0
        %1946 = vmatpush1.msra.mxu0 0.0
        %1947 = vmatprep.subr.mxu0 0.0
        %1948 = vmatpush1.msra.mxu0 0.0
        %1949 = vmatprep.subr.mxu0 0.0
        %1950 = vmatpush1.msra.mxu0 0.0
        %1951 = vmatprep.subr.mxu0 0.0
        %1952 = vmatpush1.msra.mxu0 0.0
        %1953 = vmatprep.mubr.f32.mxu0 0.0
        %1954 = vmatmul.mubr.f32.gmra.mrb[0].mxu0 %v1887
        %v1955 = vpop.f32.mrb[0].mxu0
        %v1956 = vadd.f32 %v1884, %v1955
        %v1957 = vpop.f32.mrb[0].mxu0
        %v1958 = vadd.f32 %v1884, %v1957
        %1959 = vdwg.mxu0
        %1960 = vst [vmem:[%s325] sm:$0xff] %v1813
        %1961 = vst [vmem:[%s325 + $0x8] sm:$0xff] %v1815
        %1962 = vst [vmem:[%s325 + $0x10] sm:$0xff] %v1956
        %1963 = vst [vmem:[%s325 + $0x18] sm:$0xff] %v1958
        %s1964 = sand.u32 %s202, 1
        %s1965 = sand.u32 %s202, 1
        %s1966 = smul.addr %s1965, 32
        %s1967 = scalar_lea.vmem [#allocation6], %s1966
        // Predicated region
        $region61: #{forward.1} parent=51 // pred_check
          %p1968 = pneg %p212
        $region62: #{forward.1} parent=51 // pred_check_branch
          %1970 = sbr.rel (%p1968) target = $region64
        $region63: #{forward.1} parent=51 // pred_region
          %s1971 = smul.u32 2, %s21
          %s1972 = smul.addr %s1971, 8
          %s1973 = scalar_lea.vmem %s8, %s1972
          // Predicated region
          $region65: #{forward.1} parent=63 // pred_check
            _
          $region66: #{forward.1} parent=63 // pred_check_branch
            %1975 = sbr.rel (0) target = $region68
          $region67: #{forward.1} parent=63 // pred_region
            // Predicated region
            $region69: #{forward.1} parent=67 // pred_check
              _
            $region70: #{forward.1} parent=67 // pred_check_branch
              %1977 = sbr.rel (0) target = $region72
            $region71: #{forward.1} parent=67 // pred_region
              loop: start=0, step=1, limit=1
              $region73: #{forward.1} parent=71 // loop_pre_header
                _
              $region74: #{forward.1} parent=71 // loop_header
                %s1979 = sphi 0, %s1983
                %p1980 = scmp.ge.s32.totalorder %s1979, 1
                %s1984 = sphi %s1967, %s1967
                %s1985 = sphi %s1973, %s1973
              $region75: #{forward.1} parent=71 // loop_header_branch
                %1982 = sbr.rel (%p1980) target = $region79
              $region76: #{forward.1} parent=71 // loop_body
                %v1986 = vld [vmem:[%s1984] sm:$0xff]
                %1987 = vst [vmem:[%s1985] sm:$0xff] %v1986
                %v1988 = vld [vmem:[%s1984 + $0x8] sm:$0xff]
                %1989 = vst [vmem:[%s1985 + $0x8] sm:$0xff] %v1988
                %v1990 = vld [vmem:[%s1984 + $0x10] sm:$0xff]
                %1991 = vst [vmem:[%s1985 + $0x20] sm:$0xff] %v1990
                %v1992 = vld [vmem:[%s1984 + $0x18] sm:$0xff]
                %1993 = vst [vmem:[%s1985 + $0x28] sm:$0xff] %v1992
              $region77: #{forward.1} parent=71 // loop_footer
                %s1983 = sadd.s32 1, %s1979
              $region78: #{forward.1} parent=71 // loop_footer_branch
                %1978 = sbr.rel target = $region74
              $region79: #{forward.1} parent=71 // loop_exit
                _
            $region72: #{forward.1} parent=67 // pred_fallthru
              _
            // Predicated region
            $region80: #{forward.1} parent=67 // pred_check
              _
            $region81: #{forward.1} parent=67 // pred_check_branch
              %1995 = sbr.rel target = $region83
            $region82: #{forward.1} parent=67 // pred_region
              _
            $region83: #{forward.1} parent=67 // pred_fallthru
              _
          $region68: #{forward.1} parent=63 // pred_fallthru
            _
          %1996 = vnop
        $region64: #{forward.1} parent=51 // pred_fallthru
          _
      $region52: #{forward.1} parent=5 // pred_fallthru
        _
      %p1997 = scmp.le.s32.totalorder 2, %s16
      // Predicated region
      $region84: #{forward.1} parent=5 // pred_check
        %p1998 = pneg %p1997
      $region85: #{forward.1} parent=5 // pred_check_branch
        %2000 = sbr.rel (%p1998) target = $region87
      $region86: #{forward.1} parent=5 // pred_region
        %s2001 = ssub.s32 %s16, 2
        // Predicated region
        $region88: #{forward.1} parent=86 // pred_check
          %p2002 = pneg %p218
        $region89: #{forward.1} parent=86 // pred_check_branch
          %2004 = sbr.rel (%p2002) target = $region91
        $region90: #{forward.1} parent=86 // pred_region
          %s2005 = sand.u32 %s203, 1
          %s2006 = sand.u32 %s203, 1
          %s2007 = smul.addr %s2006, 32
          %s2008 = scalar_lea.vmem [#allocation6], %s2007
        $region91: #{forward.1} parent=86 // pred_fallthru
          _
      $region87: #{forward.1} parent=5 // pred_fallthru
        _
    $region6: #{forward.1} parent=1 // loop_footer
      %s20 = sadd.s32 1, %s16
    $region7: #{forward.1} parent=1 // loop_footer_branch
      %15 = sbr.rel target = $region3
    $region8: #{forward.1} parent=1 // loop_exit
      _
    %2009 = vsyncpa [#allocation3], 1
    %s2010 = scalar_lea.sflag [#allocation3], 1
    %2011 = vsyncpa %s2010, 1
    %2012 = vsyncpa [#allocation5], 1

</llo_original>
